<compile_context>
chip_gen: v7x
topology: tpu7x:2x2x1
jax: 0.10.0
libtpu: 0.0.40
codegen_flags: <defaults>
</compile_context>

<pallas_src>
import functools
import numpy as np
import jax
import jax.numpy as jnp
from jax.experimental import pallas as pl
from jax.experimental.pallas import tpu as pltpu

LANE = 128


def _round_up(x, m):
    return ((x + m - 1) // m) * m


def _pad2(a, rows, cols):
    r, c = a.shape
    return jnp.pad(a, ((0, rows - r), (0, cols - c)))


# ----------------------------- kernel ----------------------------------------

def gen_u0_kernel(n_hid_n, n_hid_e, modes, Ey_pad, n0, C_EPSILON, dx,
                  hs_ref, e0s_ref, first_ref, hw_ref, hb_ref,
                  wnl_ref, bnl_ref, wel_ref, bel_ref,
                  ey_ref, t_ref):
    """One row tile: run both MLPs, write the Ey block and a compact T block."""
    hs = hs_ref[...]                                    # [TM, 1]  f32
    e0s = e0s_ref[...]                                  # [TM, Ey_pad] f32
    tm = hs.shape[0]

    def dot_bf16(x, w):                                 # bf16 MXU operands, f32 accum
        return jnp.dot(x.astype(jnp.bfloat16), w, preferred_element_type=jnp.float32)

    # --- neffnn: Linear(1,n)->ReLU->[Linear->ReLU]*ln->Linear(n,modes) ---------
    # first layer (in_size == 1) stays a pure f32 VPU broadcast
    h = jnp.maximum(hs * first_ref[0:1, :] + first_ref[1:2, :], 0.0)      # [TM, P]
    for l in range(n_hid_n):
        h = jnp.maximum(dot_bf16(h, hw_ref[l]) + hb_ref[l], 0.0)
    neff = dot_bf16(h, wnl_ref[...]) + bnl_ref[...]                       # [TM, 128]

    # --- enn hidden stack -------------------------------------------------------
    g = jnp.maximum(hs * first_ref[2:3, :] + first_ref[3:4, :], 0.0)      # [TM, P]
    for l in range(n_hid_e):
        g = jnp.maximum(dot_bf16(g, hw_ref[n_hid_n + l]) + hb_ref[n_hid_n + l], 0.0)

    # --- fused enn final layer: all modes in one MXU pass, one lane-dense store --
    seg_all = dot_bf16(g, wel_ref[...]) + bel_ref[...]                    # [TM, modes*Ey_pad]
    ey_ref[...] = seg_all

    # per-mode overlap sums from 128-aligned static slices (XLU); lane placement
    # via iota/where (VPU) - no cross-lane concatenates.
    lanes = jax.lax.broadcasted_iota(jnp.int32, (tm, LANE), 1)
    e_sum = jnp.zeros((tm, LANE), jnp.float32)
    for m in range(modes):
        s_m = jnp.sum(seg_all[:, m * Ey_pad:(m + 1) * Ey_pad] * e0s,
                      axis=-1, keepdims=True)                             # [TM, 1]
        e_sum = e_sum + jnp.where(lanes == m, s_m, 0.0)

    eta = neff * n0 / (neff + n0)                       # padded lanes: 0/(0+n0) = 0
    t_full = 2.0 * C_EPSILON * eta * e_sum * dx         # [TM, 128] f32
    t_ref[...] = t_full[:, :modes]                      # compact [TM, modes] store


# ----------------------------- weight packing ---------------------------------

def _prepare_params(params, *, modes, Ey_size, Ey_pad, P):
    """Pack / pad MLP weights: bf16 matmul weights, f32 biases & first layers."""
    wn, bn, we, be = params["wn"], params["bn"], params["we"], params["be"]

    # first (in_size==1) layers of both MLPs, stacked into one [8, P] f32 constant
    first = jnp.zeros((8, P), jnp.float32)
    first = first.at[0, :wn[0].shape[1]].set(wn[0][0])
    first = first.at[1, :bn[0].shape[1]].set(bn[0][0])
    first = first.at[2, :we[0].shape[1]].set(we[0][0])
    first = first.at[3, :be[0].shape[1]].set(be[0][0])

    # hidden layers of both MLPs: one bf16 weight stack + one f32 bias stack
    hid_w = [_pad2(w, P, P) for w in wn[1:-1]] + [_pad2(w, P, P) for w in we[1:-1]]
    hid_b = [_pad2(b, 1, P) for b in bn[1:-1]] + [_pad2(b, 1, P) for b in be[1:-1]]
    n_hid_n = len(wn) - 2
    n_hid_e = len(we) - 2
    if hid_w:
        hw = jnp.stack(hid_w).astype(jnp.bfloat16)      # [Lh, P, P]
        hb = jnp.stack(hid_b)                           # [Lh, 1, P] f32
    else:
        hw = jnp.zeros((1, P, P), jnp.bfloat16)
        hb = jnp.zeros((1, 1, P), jnp.float32)

    # neffnn last layer padded to 128 output lanes (zeros in padded lanes)
    wnl = _pad2(wn[-1], P, LANE).astype(jnp.bfloat16)   # [P, 128]
    bnl = _pad2(bn[-1], 1, LANE)                        # [1, 128] f32

    # enn last layer fused over modes; each mode zero-padded to Ey_pad so the
    # per-mode slices of the matmul result stay 128-aligned.
    wel = jnp.concatenate(
        [_pad2(we[-1][:, m * Ey_size:(m + 1) * Ey_size], P, Ey_pad) for m in range(modes)],
        axis=-1).astype(jnp.bfloat16)                   # [P, modes*Ey_pad]
    bel = jnp.concatenate(
        [_pad2(be[-1][:, m * Ey_size:(m + 1) * Ey_size], 1, Ey_pad) for m in range(modes)],
        axis=-1)                                        # [1, modes*Ey_pad] f32
    return first, hw, hb, wnl, bnl, wel, bel, n_hid_n, n_hid_e


# ----------------------------- tiling / VMEM ----------------------------------

def _per_row_vmem_bytes(Ey_pad, modes, P):
    # double-buffered streamed blocks: hs (lane-padded to 128) + e0s + Ey + T (lane-padded)
    stream = 2 * 4 * (128 + Ey_pad + modes * Ey_pad + 128)
    # live intermediates: h/g (f32 + bf16 copies), seg_all, neff/e_sum/eta/t_full/iota
    inter = 4 * (4 * P + 2 * modes * Ey_pad + 6 * 128)
    return stream + inter


def _choose_row_tile(N, Ey_pad, modes, P):
    per_row = _per_row_vmem_bytes(Ey_pad, modes, P)
    budget = 16 * 1024 * 1024                    # streamed + intermediates budget
    tm = budget // per_row
    tm = min(tm, 512)                            # v7x-friendly cap (64 MiB VMEM)
    # keep >= 4 grid steps so the "parallel" row axis shards across v7x TensorCores
    tm = min(tm, max(8, _round_up(-(-N // 4), 8)))
    tm = max(8, (tm // 8) * 8)
    return int(tm)


def _vmem_limit_bytes(TM, Ey_pad, modes, P, consts):
    per_row = _per_row_vmem_bytes(Ey_pad, modes, P)
    const_bytes = 2 * sum(int(np.prod(a.shape)) * a.dtype.itemsize for a in consts)
    limit = 2 * per_row * TM + const_bytes + (8 << 20)   # generous margin
    return int(min(max(limit, 24 << 20), 56 << 20))


# ----------------------------- wrapper ----------------------------------------

def gen_u0_forward(hs, E0, params, *, modes, res, N, Knn, n0, C_EPSILON, dx):
    Ey_size = 2 * (Knn + 1) * res
    Ey_pad = _round_up(Ey_size, LANE)
    assert modes <= LANE

    wn, we = params["wn"], params["we"]
    P = _round_up(max(wn[0].shape[1], we[0].shape[1]), LANE)

    TM = _choose_row_tile(N, Ey_pad, modes, P)
    N_pad = _round_up(N, TM)

    # ---- inputs: single fused pad/concat at final padded sizes ----
    pad1 = (2 * Knn + 1) * res // 2
    pad2 = (2 * Knn + 1) * res - pad1
    E0p = jnp.pad(E0.astype(jnp.float32), (pad1, pad2 + (N_pad - N) * res))
    cols = [E0p[i * res:(N_pad + i) * res].reshape(N_pad, res)
            for i in range(2 * (Knn + 1))]           # matches torch's range(6) for Knn=2
    if Ey_pad > Ey_size:
        cols.append(jnp.zeros((N_pad, Ey_pad - Ey_size), jnp.float32))
    e0s_p = jnp.concatenate(cols, axis=-1)           # [N_pad, Ey_pad], one materialization
    hs_p = jnp.pad(hs.astype(jnp.float32).reshape(N, 1), ((0, N_pad - N), (0, 0)))

    (first, hw, hb, wnl, bnl, wel, bel,
     n_hid_n, n_hid_e) = _prepare_params(params, modes=modes, Ey_size=Ey_size,
                                         Ey_pad=Ey_pad, P=P)
    consts = [first, hw, hb, wnl, bnl, wel, bel]

    kernel = functools.partial(gen_u0_kernel, n_hid_n, n_hid_e, modes, Ey_pad,
                               float(n0), float(C_EPSILON), float(dx))

    def const_spec(a):
        zeros = (0,) * a.ndim
        return pl.BlockSpec(a.shape, lambda i, z=zeros: z)   # weights stay VMEM-resident

    in_specs = ([pl.BlockSpec((TM, 1), lambda i: (i, 0)),
                 pl.BlockSpec((TM, Ey_pad), lambda i: (i, 0))]
                + [const_spec(a) for a in consts])
    out_specs = (pl.BlockSpec((TM, modes * Ey_pad), lambda i: (i, 0)),
                 pl.BlockSpec((TM, modes), lambda i: (i, 0)))

    ey_p, t_p = pl.pallas_call(
        kernel,
        out_shape=(jax.ShapeDtypeStruct((N_pad, modes * Ey_pad), jnp.float32),
                   jax.ShapeDtypeStruct((N_pad, modes), jnp.float32)),
        grid=(N_pad // TM,),
        in_specs=in_specs,
        out_specs=out_specs,
        compiler_params=pltpu.CompilerParams(
            dimension_semantics=("parallel",),
            vmem_limit_bytes=_vmem_limit_bytes(TM, Ey_pad, modes, P, consts)),
    )(hs_p, e0s_p, *consts)

    # contiguous reshape is a free bitcast; slices drop padding
    Ey = ey_p[:N].reshape(N, modes, Ey_pad)[:, :, :Ey_size]
    T = t_p[:N].reshape(-1)                          # matches torch T.view(-1)
    return Ey, T


# -------------------------- param init / reference ----------------------------

def init_mlp(key, in_size, out_size, layers, nodes):
    dims = [(in_size, nodes)] + [(nodes, nodes)] * layers + [(nodes, out_size)]
    ws, bs = [], []
    for di, do in dims:
        key, k1, k2 = jax.random.split(key, 3)
        scale = 1.0 / np.sqrt(di)
        ws.append(jax.random.uniform(k1, (di, do), jnp.float32, -scale, scale))
        bs.append(jax.random.uniform(k2, (1, do), jnp.float32, -scale, scale))
    return ws, bs, key


def _mlp_ref(x, ws, bs):
    # Same numerics as the kernel: f32 first layer (in_size==1 broadcast),
    # bf16 MXU operands with f32 accumulation, f32 biases.
    h = jnp.maximum(x * ws[0] + bs[0], 0.0)
    for w, b in zip(ws[1:-1], bs[1:-1]):
        h = jnp.maximum(
            jnp.dot(h.astype(jnp.bfloat16), w.astype(jnp.bfloat16),
                    preferred_element_type=jnp.float32) + b, 0.0)
    return (jnp.dot(h.astype(jnp.bfloat16), ws[-1].astype(jnp.bfloat16),
                    preferred_element_type=jnp.float32) + bs[-1])


def gen_u0_reference(hs, E0, params, *, modes, res, N, Knn, n0, C_EPSILON, dx):
    Ey_size = 2 * (Knn + 1) * res
    pad1 = (2 * Knn + 1) * res // 2
    pad2 = (2 * Knn + 1) * res - pad1
    E0p = jnp.pad(E0, (pad1, pad2))
    slices = [E0p[i * res:(N + i) * res].reshape(N, 1, res) for i in range(2 * (Knn + 1))]
    E0_slice = jnp.concatenate(slices, axis=-1)          # [N, 1, Ey_size]
    hs2d = hs.reshape(N, 1)
    neff = _mlp_ref(hs2d, params["wn"], params["bn"])    # [N, modes]
    Ey = _mlp_ref(hs2d, params["we"], params["be"]).reshape(N, modes, Ey_size)
    E_sum = jnp.sum(Ey * E0_slice, axis=-1)              # [N, modes]
    eta = neff * n0 / (neff + n0)
    T = (2.0 * C_EPSILON * eta * E_sum * dx).reshape(-1)
    return Ey, T


# ----------------------------- main --------------------------------------------

if __name__ == "__main__":
    # small, forward-consistent shapes (Knn=2 matches the hard-coded range(6))
    modes, node_n, ln = 2, 32, 2
    node_e, le = 32, 2
    res, N, Knn = 8, 32, 2
    n0, C_EPSILON, dx = 1.0, 1.0, 0.01

    Ey_size = 2 * (Knn + 1) * res
    enn_out_size = modes * Ey_size

    key = jax.random.PRNGKey(0)
    wn, bn, key = init_mlp(key, 1, modes, ln, node_n)          # neffnn weights
    we, be, key = init_mlp(key, 1, enn_out_size, le, node_e)   # enn weights
    params = {"wn": wn, "bn": bn, "we": we, "be": be}

    key, k_hs, k_e0 = jax.random.split(key, 3)
    hs = jax.random.uniform(k_hs, (N,), jnp.float32, 0.2, 0.8)
    E0 = jax.random.normal(k_e0, ((N + 2 * Knn + 1) * res,), jnp.float32)

    fwd = jax.jit(functools.partial(gen_u0_forward, modes=modes, res=res, N=N,
                                    Knn=Knn, n0=n0, C_EPSILON=C_EPSILON, dx=dx))
    Ey, T = fwd(hs, E0, params)
    jax.block_until_ready((Ey, T))

    Ey_ref, T_ref = gen_u0_reference(hs, E0, params, modes=modes, res=res, N=N,
                                     Knn=Knn, n0=n0, C_EPSILON=C_EPSILON, dx=dx)
    assert Ey.shape == (N, modes, Ey_size) and T.shape == (N * modes,)
    np.testing.assert_allclose(np.asarray(Ey), np.asarray(Ey_ref), rtol=2e-3, atol=1e-5)
    np.testing.assert_allclose(np.asarray(T), np.asarray(T_ref), rtol=2e-3, atol=1e-5)

    print("KERNEL_OK")
</pallas_src>

<mosaic_0001>
module attributes {stable_mosaic.version = 11 : i64} {
  func.func @gen_u0_kernel(%arg0: i32, %arg1: memref<8x1xf32, #tpu.memory_space<vmem>>, %arg2: memref<8x128xf32, #tpu.memory_space<vmem>>, %arg3: memref<8x128xf32, #tpu.memory_space<vmem>>, %arg4: memref<4x128x128xbf16, #tpu.memory_space<vmem>>, %arg5: memref<4x1x128xf32, #tpu.memory_space<vmem>>, %arg6: memref<128x128xbf16, #tpu.memory_space<vmem>>, %arg7: memref<1x128xf32, #tpu.memory_space<vmem>>, %arg8: memref<128x256xbf16, #tpu.memory_space<vmem>>, %arg9: memref<1x256xf32, #tpu.memory_space<vmem>>, %arg10: memref<8x256xf32, #tpu.memory_space<vmem>>, %arg11: memref<8x2xf32, #tpu.memory_space<vmem>>) attributes {dimension_semantics = [#tpu.dimension_semantics<parallel>], iteration_bounds = array<i64: 4>, scalar_prefetch = 0 : i64, scratch_operands = 0 : i64, tpu.core_type = #tpu.core_type<tc>, window_params = [{transform_indices = @transform_0, window_bounds = array<i64: 8, 1>}, {transform_indices = @transform_1, window_bounds = array<i64: 8, 128>}, {pipeline_mode = #tpu.pipeline_mode<synchronous>, transform_indices = @transform_2, window_bounds = array<i64: 8, 128>}, {pipeline_mode = #tpu.pipeline_mode<synchronous>, transform_indices = @transform_3, window_bounds = array<i64: 4, 128, 128>}, {pipeline_mode = #tpu.pipeline_mode<synchronous>, transform_indices = @transform_4, window_bounds = array<i64: 4, 1, 128>}, {pipeline_mode = #tpu.pipeline_mode<synchronous>, transform_indices = @transform_5, window_bounds = array<i64: 128, 128>}, {pipeline_mode = #tpu.pipeline_mode<synchronous>, transform_indices = @transform_6, window_bounds = array<i64: 1, 128>}, {pipeline_mode = #tpu.pipeline_mode<synchronous>, transform_indices = @transform_7, window_bounds = array<i64: 128, 256>}, {pipeline_mode = #tpu.pipeline_mode<synchronous>, transform_indices = @transform_8, window_bounds = array<i64: 1, 256>}, {transform_indices = @transform_9, window_bounds = array<i64: 8, 256>}, {transform_indices = @transform_10, window_bounds = array<i64: 8, 2>}]} {
    %c0 = arith.constant 0 : index
    %c0_0 = arith.constant 0 : index
    %0 = vector.load %arg1[%c0, %c0_0] : memref<8x1xf32, #tpu.memory_space<vmem>>, vector<8x1xf32>
    %c0_1 = arith.constant 0 : index
    %c0_2 = arith.constant 0 : index
    %1 = vector.load %arg2[%c0_1, %c0_2] : memref<8x128xf32, #tpu.memory_space<vmem>>, vector<8x128xf32>
    %c0_3 = arith.constant 0 : index
    %c0_4 = arith.constant 0 : index
    %2 = vector.load %arg3[%c0_3, %c0_4] : memref<8x128xf32, #tpu.memory_space<vmem>>, vector<1x128xf32>
    %3 = vector.broadcast %0 : vector<8x1xf32> to vector<8x128xf32>
    %4 = vector.broadcast %2 : vector<1x128xf32> to vector<8x128xf32>
    %5 = arith.mulf %3, %4 : vector<8x128xf32>
    %c1 = arith.constant 1 : index
    %c0_5 = arith.constant 0 : index
    %6 = vector.load %arg3[%c1, %c0_5] : memref<8x128xf32, #tpu.memory_space<vmem>>, vector<1x128xf32>
    %7 = vector.broadcast %6 : vector<1x128xf32> to vector<8x128xf32>
    %8 = arith.addf %5, %7 : vector<8x128xf32>
    %cst = arith.constant 0.000000e+00 : f32
    %9 = vector.broadcast %cst : f32 to vector<8x128xf32>
    %10 = arith.maximumf %8, %9 : vector<8x128xf32>
    %c0_6 = arith.constant 0 : index
    %c0_7 = arith.constant 0 : index
    %c0_8 = arith.constant 0 : index
    %11 = vector.load %arg4[%c0_6, %c0_7, %c0_8] : memref<4x128x128xbf16, #tpu.memory_space<vmem>>, vector<1x128x128xbf16>
    %12 = vector.shape_cast %11 : vector<1x128x128xbf16> to vector<128x128xbf16>
    %13 = arith.truncf %10 : vector<8x128xf32> to vector<8x128xbf16>
    %cst_9 = arith.constant dense<0.000000e+00> : vector<8x128xf32>
    %14 = tpu.matmul %13, %12, %cst_9 {dimension_numbers = #tpu.dot_dimension_numbers<[1], [0], [0], [1], [0, 0, 1, 1], [], []>} : vector<8x128xbf16>, vector<128x128xbf16>, vector<8x128xf32> -> vector<8x128xf32>
    %c0_10 = arith.constant 0 : index
    %c0_11 = arith.constant 0 : index
    %c0_12 = arith.constant 0 : index
    %15 = vector.load %arg5[%c0_10, %c0_11, %c0_12] : memref<4x1x128xf32, #tpu.memory_space<vmem>>, vector<1x1x128xf32>
    %16 = vector.shape_cast %15 : vector<1x1x128xf32> to vector<1x128xf32>
    %17 = vector.broadcast %16 : vector<1x128xf32> to vector<8x128xf32>
    %18 = arith.addf %14, %17 : vector<8x128xf32>
    %cst_13 = arith.constant 0.000000e+00 : f32
    %19 = vector.broadcast %cst_13 : f32 to vector<8x128xf32>
    %20 = arith.maximumf %18, %19 : vector<8x128xf32>
    %c1_14 = arith.constant 1 : index
    %c0_15 = arith.constant 0 : index
    %c0_16 = arith.constant 0 : index
    %21 = vector.load %arg4[%c1_14, %c0_15, %c0_16] : memref<4x128x128xbf16, #tpu.memory_space<vmem>>, vector<1x128x128xbf16>
    %22 = vector.shape_cast %21 : vector<1x128x128xbf16> to vector<128x128xbf16>
    %23 = arith.truncf %20 : vector<8x128xf32> to vector<8x128xbf16>
    %cst_17 = arith.constant dense<0.000000e+00> : vector<8x128xf32>
    %24 = tpu.matmul %23, %22, %cst_17 {dimension_numbers = #tpu.dot_dimension_numbers<[1], [0], [0], [1], [0, 0, 1, 1], [], []>} : vector<8x128xbf16>, vector<128x128xbf16>, vector<8x128xf32> -> vector<8x128xf32>
    %c1_18 = arith.constant 1 : index
    %c0_19 = arith.constant 0 : index
    %c0_20 = arith.constant 0 : index
    %25 = vector.load %arg5[%c1_18, %c0_19, %c0_20] : memref<4x1x128xf32, #tpu.memory_space<vmem>>, vector<1x1x128xf32>
    %26 = vector.shape_cast %25 : vector<1x1x128xf32> to vector<1x128xf32>
    %27 = vector.broadcast %26 : vector<1x128xf32> to vector<8x128xf32>
    %28 = arith.addf %24, %27 : vector<8x128xf32>
    %cst_21 = arith.constant 0.000000e+00 : f32
    %29 = vector.broadcast %cst_21 : f32 to vector<8x128xf32>
    %30 = arith.maximumf %28, %29 : vector<8x128xf32>
    %c0_22 = arith.constant 0 : index
    %c0_23 = arith.constant 0 : index
    %31 = vector.load %arg6[%c0_22, %c0_23] : memref<128x128xbf16, #tpu.memory_space<vmem>>, vector<128x128xbf16>
    %32 = arith.truncf %30 : vector<8x128xf32> to vector<8x128xbf16>
    %cst_24 = arith.constant dense<0.000000e+00> : vector<8x128xf32>
    %33 = tpu.matmul %32, %31, %cst_24 {dimension_numbers = #tpu.dot_dimension_numbers<[1], [0], [0], [1], [0, 0, 1, 1], [], []>} : vector<8x128xbf16>, vector<128x128xbf16>, vector<8x128xf32> -> vector<8x128xf32>
    %c0_25 = arith.constant 0 : index
    %c0_26 = arith.constant 0 : index
    %34 = vector.load %arg7[%c0_25, %c0_26] : memref<1x128xf32, #tpu.memory_space<vmem>>, vector<1x128xf32>
    %35 = vector.broadcast %34 : vector<1x128xf32> to vector<8x128xf32>
    %36 = arith.addf %33, %35 : vector<8x128xf32>
    %c2 = arith.constant 2 : index
    %c0_27 = arith.constant 0 : index
    %37 = vector.load %arg3[%c2, %c0_27] : memref<8x128xf32, #tpu.memory_space<vmem>>, vector<1x128xf32>
    %38 = vector.broadcast %0 : vector<8x1xf32> to vector<8x128xf32>
    %39 = vector.broadcast %37 : vector<1x128xf32> to vector<8x128xf32>
    %40 = arith.mulf %38, %39 : vector<8x128xf32>
    %c3 = arith.constant 3 : index
    %c0_28 = arith.constant 0 : index
    %41 = vector.load %arg3[%c3, %c0_28] : memref<8x128xf32, #tpu.memory_space<vmem>>, vector<1x128xf32>
    %42 = vector.broadcast %41 : vector<1x128xf32> to vector<8x128xf32>
    %43 = arith.addf %40, %42 : vector<8x128xf32>
    %cst_29 = arith.constant 0.000000e+00 : f32
    %44 = vector.broadcast %cst_29 : f32 to vector<8x128xf32>
    %45 = arith.maximumf %43, %44 : vector<8x128xf32>
    %c2_30 = arith.constant 2 : index
    %c0_31 = arith.constant 0 : index
    %c0_32 = arith.constant 0 : index
    %46 = vector.load %arg4[%c2_30, %c0_31, %c0_32] : memref<4x128x128xbf16, #tpu.memory_space<vmem>>, vector<1x128x128xbf16>
    %47 = vector.shape_cast %46 : vector<1x128x128xbf16> to vector<128x128xbf16>
    %48 = arith.truncf %45 : vector<8x128xf32> to vector<8x128xbf16>
    %cst_33 = arith.constant dense<0.000000e+00> : vector<8x128xf32>
    %49 = tpu.matmul %48, %47, %cst_33 {dimension_numbers = #tpu.dot_dimension_numbers<[1], [0], [0], [1], [0, 0, 1, 1], [], []>} : vector<8x128xbf16>, vector<128x128xbf16>, vector<8x128xf32> -> vector<8x128xf32>
    %c2_34 = arith.constant 2 : index
    %c0_35 = arith.constant 0 : index
    %c0_36 = arith.constant 0 : index
    %50 = vector.load %arg5[%c2_34, %c0_35, %c0_36] : memref<4x1x128xf32, #tpu.memory_space<vmem>>, vector<1x1x128xf32>
    %51 = vector.shape_cast %50 : vector<1x1x128xf32> to vector<1x128xf32>
    %52 = vector.broadcast %51 : vector<1x128xf32> to vector<8x128xf32>
    %53 = arith.addf %49, %52 : vector<8x128xf32>
    %cst_37 = arith.constant 0.000000e+00 : f32
    %54 = vector.broadcast %cst_37 : f32 to vector<8x128xf32>
    %55 = arith.maximumf %53, %54 : vector<8x128xf32>
    %c3_38 = arith.constant 3 : index
    %c0_39 = arith.constant 0 : index
    %c0_40 = arith.constant 0 : index
    %56 = vector.load %arg4[%c3_38, %c0_39, %c0_40] : memref<4x128x128xbf16, #tpu.memory_space<vmem>>, vector<1x128x128xbf16>
    %57 = vector.shape_cast %56 : vector<1x128x128xbf16> to vector<128x128xbf16>
    %58 = arith.truncf %55 : vector<8x128xf32> to vector<8x128xbf16>
    %cst_41 = arith.constant dense<0.000000e+00> : vector<8x128xf32>
    %59 = tpu.matmul %58, %57, %cst_41 {dimension_numbers = #tpu.dot_dimension_numbers<[1], [0], [0], [1], [0, 0, 1, 1], [], []>} : vector<8x128xbf16>, vector<128x128xbf16>, vector<8x128xf32> -> vector<8x128xf32>
    %c3_42 = arith.constant 3 : index
    %c0_43 = arith.constant 0 : index
    %c0_44 = arith.constant 0 : index
    %60 = vector.load %arg5[%c3_42, %c0_43, %c0_44] : memref<4x1x128xf32, #tpu.memory_space<vmem>>, vector<1x1x128xf32>
    %61 = vector.shape_cast %60 : vector<1x1x128xf32> to vector<1x128xf32>
    %62 = vector.broadcast %61 : vector<1x128xf32> to vector<8x128xf32>
    %63 = arith.addf %59, %62 : vector<8x128xf32>
    %cst_45 = arith.constant 0.000000e+00 : f32
    %64 = vector.broadcast %cst_45 : f32 to vector<8x128xf32>
    %65 = arith.maximumf %63, %64 : vector<8x128xf32>
    %c0_46 = arith.constant 0 : index
    %c0_47 = arith.constant 0 : index
    %66 = vector.load %arg8[%c0_46, %c0_47] : memref<128x256xbf16, #tpu.memory_space<vmem>>, vector<128x256xbf16>
    %67 = arith.truncf %65 : vector<8x128xf32> to vector<8x128xbf16>
    %cst_48 = arith.constant dense<0.000000e+00> : vector<8x256xf32>
    %68 = tpu.matmul %67, %66, %cst_48 {dimension_numbers = #tpu.dot_dimension_numbers<[1], [0], [0], [1], [0, 0, 1, 1], [], []>} : vector<8x128xbf16>, vector<128x256xbf16>, vector<8x256xf32> -> vector<8x256xf32>
    %c0_49 = arith.constant 0 : index
    %c0_50 = arith.constant 0 : index
    %69 = vector.load %arg9[%c0_49, %c0_50] : memref<1x256xf32, #tpu.memory_space<vmem>>, vector<1x256xf32>
    %70 = vector.broadcast %69 : vector<1x256xf32> to vector<8x256xf32>
    %71 = arith.addf %68, %70 : vector<8x256xf32>
    %c0_51 = arith.constant 0 : index
    %c0_52 = arith.constant 0 : index
    %72 = vector.load %arg10[%c0_51, %c0_52] : memref<8x256xf32, #tpu.memory_space<vmem>>, vector<8x256xf32>
    tpu.vector_store %arg10[%c0_51, %c0_52], %71 {strides = array<i32>} : memref<8x256xf32, #tpu.memory_space<vmem>>, vector<8x256xf32>,
    %73 = tpu.iota {dimensions = array<i32: 1>} : vector<8x128xi32>
    %cst_53 = arith.constant 0.000000e+00 : f32
    %74 = vector.broadcast %cst_53 : f32 to vector<8x128xf32>
    %75 = vector.extract_strided_slice %71 {offsets = [0, 0], sizes = [8, 128], strides = [1, 1]} : vector<8x256xf32> to vector<8x128xf32>
    %76 = arith.mulf %75, %1 : vector<8x128xf32>
    %cst_54 = arith.constant dense<0.000000e+00> : vector<8xf32>
    %77 = vector.multi_reduction <add>, %76, %cst_54 [1] : vector<8x128xf32> to vector<8xf32>
    %78 = vector.shape_cast %77 : vector<8xf32> to vector<8x1xf32>
    %c0_i32 = arith.constant 0 : i32
    %79 = vector.broadcast %c0_i32 : i32 to vector<8x128xi32>
    %80 = arith.cmpi eq, %73, %79 : vector<8x128xi32>
    %cst_55 = arith.constant 0.000000e+00 : f32
    %81 = vector.shape_cast %78 : vector<8x1xf32> to vector<8x1xf32>
    %82 = vector.broadcast %81 : vector<8x1xf32> to vector<8x128xf32>
    %83 = vector.broadcast %cst_55 : f32 to vector<8x128xf32>
    %84 = arith.select %80, %82, %83 : vector<8x128xi1>, vector<8x128xf32>
    %85 = arith.addf %74, %84 : vector<8x128xf32>
    %86 = vector.extract_strided_slice %71 {offsets = [0, 128], sizes = [8, 128], strides = [1, 1]} : vector<8x256xf32> to vector<8x128xf32>
    %87 = arith.mulf %86, %1 : vector<8x128xf32>
    %cst_56 = arith.constant dense<0.000000e+00> : vector<8xf32>
    %88 = vector.multi_reduction <add>, %87, %cst_56 [1] : vector<8x128xf32> to vector<8xf32>
    %89 = vector.shape_cast %88 : vector<8xf32> to vector<8x1xf32>
    %c1_i32 = arith.constant 1 : i32
    %90 = vector.broadcast %c1_i32 : i32 to vector<8x128xi32>
    %91 = arith.cmpi eq, %73, %90 : vector<8x128xi32>
    %cst_57 = arith.constant 0.000000e+00 : f32
    %92 = vector.shape_cast %89 : vector<8x1xf32> to vector<8x1xf32>
    %93 = vector.broadcast %92 : vector<8x1xf32> to vector<8x128xf32>
    %94 = vector.broadcast %cst_57 : f32 to vector<8x128xf32>
    %95 = arith.select %91, %93, %94 : vector<8x128xi1>, vector<8x128xf32>
    %96 = arith.addf %85, %95 : vector<8x128xf32>
    %cst_58 = arith.constant 1.000000e+00 : f32
    %97 = vector.broadcast %cst_58 : f32 to vector<8x128xf32>
    %98 = arith.mulf %36, %97 : vector<8x128xf32>
    %cst_59 = arith.constant 1.000000e+00 : f32
    %99 = vector.broadcast %cst_59 : f32 to vector<8x128xf32>
    %100 = arith.addf %36, %99 : vector<8x128xf32>
    %101 = arith.divf %98, %100 : vector<8x128xf32>
    %cst_60 = arith.constant 2.000000e+00 : f32
    %102 = vector.broadcast %cst_60 : f32 to vector<8x128xf32>
    %103 = arith.mulf %102, %101 : vector<8x128xf32>
    %104 = arith.mulf %103, %96 : vector<8x128xf32>
    %cst_61 = arith.constant 0.00999999977 : f32
    %105 = vector.broadcast %cst_61 : f32 to vector<8x128xf32>
    %106 = arith.mulf %104, %105 : vector<8x128xf32>
    %107 = vector.extract_strided_slice %106 {offsets = [0, 0], sizes = [8, 2], strides = [1, 1]} : vector<8x128xf32> to vector<8x2xf32>
    %c0_62 = arith.constant 0 : index
    %c0_63 = arith.constant 0 : index
    %108 = vector.load %arg11[%c0_62, %c0_63] : memref<8x2xf32, #tpu.memory_space<vmem>>, vector<8x2xf32>
    tpu.vector_store %arg11[%c0_62, %c0_63], %107 {strides = array<i32>} : memref<8x2xf32, #tpu.memory_space<vmem>>, vector<8x2xf32>,
    return
  }
  func.func @transform_0(%arg0: i32) -> (i32, i32) {
    %c0_i32 = arith.constant 0 : i32
    %c0_i32_0 = arith.constant 0 : i32
    return %arg0, %c0_i32 : i32, i32
  }
  func.func @transform_1(%arg0: i32) -> (i32, i32) {
    %c0_i32 = arith.constant 0 : i32
    %c0_i32_0 = arith.constant 0 : i32
    return %arg0, %c0_i32 : i32, i32
  }
  func.func @transform_2(%arg0: i32) -> (i32, i32) {
    %c0_i32 = arith.constant 0 : i32
    %c0_i32_0 = arith.constant 0 : i32
    %c0_i32_1 = arith.constant 0 : i32
    return %c0_i32, %c0_i32_0 : i32, i32
  }
  func.func @transform_3(%arg0: i32) -> (i32, i32, i32) {
    %c0_i32 = arith.constant 0 : i32
    %c0_i32_0 = arith.constant 0 : i32
    %c0_i32_1 = arith.constant 0 : i32
    %c0_i32_2 = arith.constant 0 : i32
    return %c0_i32, %c0_i32_0, %c0_i32_1 : i32, i32, i32
  }
  func.func @transform_4(%arg0: i32) -> (i32, i32, i32) {
    %c0_i32 = arith.constant 0 : i32
    %c0_i32_0 = arith.constant 0 : i32
    %c0_i32_1 = arith.constant 0 : i32
    %c0_i32_2 = arith.constant 0 : i32
    return %c0_i32, %c0_i32_0, %c0_i32_1 : i32, i32, i32
  }
  func.func @transform_5(%arg0: i32) -> (i32, i32) {
    %c0_i32 = arith.constant 0 : i32
    %c0_i32_0 = arith.constant 0 : i32
    %c0_i32_1 = arith.constant 0 : i32
    return %c0_i32, %c0_i32_0 : i32, i32
  }
  func.func @transform_6(%arg0: i32) -> (i32, i32) {
    %c0_i32 = arith.constant 0 : i32
    %c0_i32_0 = arith.constant 0 : i32
    %c0_i32_1 = arith.constant 0 : i32
    return %c0_i32, %c0_i32_0 : i32, i32
  }
  func.func @transform_7(%arg0: i32) -> (i32, i32) {
    %c0_i32 = arith.constant 0 : i32
    %c0_i32_0 = arith.constant 0 : i32
    %c0_i32_1 = arith.constant 0 : i32
    return %c0_i32, %c0_i32_0 : i32, i32
  }
  func.func @transform_8(%arg0: i32) -> (i32, i32) {
    %c0_i32 = arith.constant 0 : i32
    %c0_i32_0 = arith.constant 0 : i32
    %c0_i32_1 = arith.constant 0 : i32
    return %c0_i32, %c0_i32_0 : i32, i32
  }
  func.func @transform_9(%arg0: i32) -> (i32, i32) {
    %c0_i32 = arith.constant 0 : i32
    %c0_i32_0 = arith.constant 0 : i32
    return %arg0, %c0_i32 : i32, i32
  }
  func.func @transform_10(%arg0: i32) -> (i32, i32) {
    %c0_i32 = arith.constant 0 : i32
    %c0_i32_0 = arith.constant 0 : i32
    return %arg0, %c0_i32 : i32, i32
  }
}

</mosaic_0001>

<llo_original>
// kernel: gen_u0_forward.1
$region0: #{gen_u0_forward.1}
  #allocation0 [shape = 'u32[]', space=smem, size = 0x4, offset = 0x4, fixed_abs, tag = 'smem constant byte address 0x4 - core index']
  #allocation1 [shape = 'u32[144,128]{1,0:T(1,128)}', space=vmem, size = 0x12000, scoped, tag = 'internal scratch']
  %s0 = inlined_call_operand.vmem [shape: f32[32,1], index: 0, kind: input, shape index: {}]
  %s1 = inlined_call_operand.vmem [shape: f32[32,128], index: 1, kind: input, shape index: {}]
  %s2 = inlined_call_operand.vmem [shape: f32[8,128], index: 2, kind: input, shape index: {}]
  %s3 = inlined_call_operand.vmem [shape: bf16[4,128,128], index: 3, kind: input, shape index: {}]
  %s4 = inlined_call_operand.vmem [shape: f32[4,1,128], index: 4, kind: input, shape index: {}]
  %s5 = inlined_call_operand.vmem [shape: bf16[128,128], index: 5, kind: input, shape index: {}]
  %s6 = inlined_call_operand.vmem [shape: f32[1,128], index: 6, kind: input, shape index: {}]
  %s7 = inlined_call_operand.vmem [shape: bf16[128,256], index: 7, kind: input, shape index: {}]
  %s8 = inlined_call_operand.vmem [shape: f32[1,256], index: 8, kind: input, shape index: {}]
  %s9 = inlined_call_operand.vmem [shape: f32[32,256], index: 9, kind: output, shape index: {0}]
  %s10 = inlined_call_operand.vmem [shape: f32[32,2], index: 10, kind: output, shape index: {1}]
  %11 = xla_tuple %s9, %s10
  %s12 = sld [smem:[#allocation0]]
  $region77: #{gen_u0_forward.1} parent=0
    _
  %s14 = ssub.s32 1, %s12
  %s15 = scalar_select 0, %s14, %s12
  loop: start=0, step=1, limit=6
  $region2: #{gen_u0_forward.1} parent=0 // loop_pre_header
    _
  $region3: #{gen_u0_forward.1} parent=0 // loop_header
    %s17 = sphi 0, %s21
    %p18 = scmp.ge.s32.totalorder %s17, 6
    %s27 = sphi 0, %s29
    %s30 = sphi 0, %s27
    %s31 = sphi 0, %s30
    %s47 = sphi 0, %s31
    %s53 = sphi 0, %s55
    %s56 = sphi 0, %s53
    %s57 = sphi 0, %s56
    %s73 = sphi 0, %s57
    %s77 = sphi 0, %s77
    %s79 = sphi 0, %s77
    %s80 = sphi 0, %s79
    %s94 = sphi 0, %s80
    %s98 = sphi 0, %s98
    %s100 = sphi 0, %s98
    %s101 = sphi 0, %s100
    %s115 = sphi 0, %s101
    %s119 = sphi 0, %s119
    %s121 = sphi 0, %s119
    %s122 = sphi 0, %s121
    %s136 = sphi 0, %s122
    %s140 = sphi 0, %s140
    %s142 = sphi 0, %s140
    %s143 = sphi 0, %s142
    %s157 = sphi 0, %s143
    %s161 = sphi 0, %s161
    %s163 = sphi 0, %s161
    %s164 = sphi 0, %s163
    %s178 = sphi 0, %s164
    %s182 = sphi 0, %s182
    %s184 = sphi 0, %s182
    %s185 = sphi 0, %s184
    %s199 = sphi 0, %s185
    %s203 = sphi 0, %s203
    %s205 = sphi 0, %s203
    %s206 = sphi 0, %s205
    %s220 = sphi 0, %s206
    %s226 = sphi 0, %s228
    %s229 = sphi 0, %s226
    %s230 = sphi 0, %s229
    %s246 = sphi 0, %s230
    %s252 = sphi 0, %s254
    %s255 = sphi 0, %s252
    %s256 = sphi 0, %s255
    %s272 = sphi 0, %s256
  $region4: #{gen_u0_forward.1} parent=0 // loop_header_branch
    %20 = sbr.rel (%p18) target = $region8
  $region5: #{gen_u0_forward.1} parent=0 // loop_body
    %s22 = ssub.s32 %s17, 1
    %s23 = ssub.s32 %s17, 2
    %s24 = sadd.s32 %s17, 1
    %s25 = ssub.s32 %s17, %s24
    %p26 = scmp.eq.s32.totalorder %s25, 0
    %s28 = sadd.s32 %s27, 1
    %s29 = scalar_select %p26, %s27, %s28
    %p32 = pneg %p26
    %p33 = scmp.eq.s32.totalorder %s17, 3
    %p34 = por %p32, %p33
    %p35 = scmp.ne.s32.totalorder %s27, %s30
    %p36 = scmp.eq.s32.totalorder %s17, 0
    %p37 = por %p35, %p36
    %p38 = scmp.ne.s32.totalorder %s27, %s30
    %p39 = scmp.eq.s32.totalorder %s22, 3
    %p40 = por %p38, %p39
    %p41 = scmp.ne.s32.totalorder %s30, %s31
    %p42 = scmp.eq.s32.totalorder %s22, 0
    %p43 = por %p41, %p42
    %p44 = scmp.ne.s32.totalorder %s30, %s31
    %p45 = scmp.eq.s32.totalorder %s23, 3
    %p46 = por %p44, %p45
    %p48 = scmp.ne.s32.totalorder %s31, %s47
    %p49 = scmp.eq.s32.totalorder %s23, 0
    %p50 = por %p48, %p49
    %s51 = ssub.s32 %s17, %s24
    %p52 = scmp.eq.s32.totalorder %s51, 0
    %s54 = sadd.s32 %s53, 1
    %s55 = scalar_select %p52, %s53, %s54
    %p58 = pneg %p52
    %p59 = scmp.eq.s32.totalorder %s17, 3
    %p60 = por %p58, %p59
    %p61 = scmp.ne.s32.totalorder %s53, %s56
    %p62 = scmp.eq.s32.totalorder %s17, 0
    %p63 = por %p61, %p62
    %p64 = scmp.ne.s32.totalorder %s53, %s56
    %p65 = scmp.eq.s32.totalorder %s22, 3
    %p66 = por %p64, %p65
    %p67 = scmp.ne.s32.totalorder %s56, %s57
    %p68 = scmp.eq.s32.totalorder %s22, 0
    %p69 = por %p67, %p68
    %p70 = scmp.ne.s32.totalorder %s56, %s57
    %p71 = scmp.eq.s32.totalorder %s23, 3
    %p72 = por %p70, %p71
    %p74 = scmp.ne.s32.totalorder %s57, %s73
    %p75 = scmp.eq.s32.totalorder %s23, 0
    %p76 = por %p74, %p75
    %s78 = sadd.s32 %s77, 1
    %p81 = scmp.eq.s32.totalorder %s17, 3
    %p82 = scmp.ne.s32.totalorder %s77, %s79
    %p83 = scmp.eq.s32.totalorder %s17, 0
    %p84 = por %p82, %p83
    %p85 = scmp.ne.s32.totalorder %s77, %s79
    %p86 = scmp.eq.s32.totalorder %s22, 3
    %p87 = por %p85, %p86
    %p88 = scmp.ne.s32.totalorder %s79, %s80
    %p89 = scmp.eq.s32.totalorder %s22, 0
    %p90 = por %p88, %p89
    %p91 = scmp.ne.s32.totalorder %s79, %s80
    %p92 = scmp.eq.s32.totalorder %s23, 3
    %p93 = por %p91, %p92
    %p95 = scmp.ne.s32.totalorder %s80, %s94
    %p96 = scmp.eq.s32.totalorder %s23, 0
    %p97 = por %p95, %p96
    %s99 = sadd.s32 %s98, 1
    %p102 = scmp.eq.s32.totalorder %s17, 3
    %p103 = scmp.ne.s32.totalorder %s98, %s100
    %p104 = scmp.eq.s32.totalorder %s17, 0
    %p105 = por %p103, %p104
    %p106 = scmp.ne.s32.totalorder %s98, %s100
    %p107 = scmp.eq.s32.totalorder %s22, 3
    %p108 = por %p106, %p107
    %p109 = scmp.ne.s32.totalorder %s100, %s101
    %p110 = scmp.eq.s32.totalorder %s22, 0
    %p111 = por %p109, %p110
    %p112 = scmp.ne.s32.totalorder %s100, %s101
    %p113 = scmp.eq.s32.totalorder %s23, 3
    %p114 = por %p112, %p113
    %p116 = scmp.ne.s32.totalorder %s101, %s115
    %p117 = scmp.eq.s32.totalorder %s23, 0
    %p118 = por %p116, %p117
    %s120 = sadd.s32 %s119, 1
    %p123 = scmp.eq.s32.totalorder %s17, 3
    %p124 = scmp.ne.s32.totalorder %s119, %s121
    %p125 = scmp.eq.s32.totalorder %s17, 0
    %p126 = por %p124, %p125
    %p127 = scmp.ne.s32.totalorder %s119, %s121
    %p128 = scmp.eq.s32.totalorder %s22, 3
    %p129 = por %p127, %p128
    %p130 = scmp.ne.s32.totalorder %s121, %s122
    %p131 = scmp.eq.s32.totalorder %s22, 0
    %p132 = por %p130, %p131
    %p133 = scmp.ne.s32.totalorder %s121, %s122
    %p134 = scmp.eq.s32.totalorder %s23, 3
    %p135 = por %p133, %p134
    %p137 = scmp.ne.s32.totalorder %s122, %s136
    %p138 = scmp.eq.s32.totalorder %s23, 0
    %p139 = por %p137, %p138
    %s141 = sadd.s32 %s140, 1
    %p144 = scmp.eq.s32.totalorder %s17, 3
    %p145 = scmp.ne.s32.totalorder %s140, %s142
    %p146 = scmp.eq.s32.totalorder %s17, 0
    %p147 = por %p145, %p146
    %p148 = scmp.ne.s32.totalorder %s140, %s142
    %p149 = scmp.eq.s32.totalorder %s22, 3
    %p150 = por %p148, %p149
    %p151 = scmp.ne.s32.totalorder %s142, %s143
    %p152 = scmp.eq.s32.totalorder %s22, 0
    %p153 = por %p151, %p152
    %p154 = scmp.ne.s32.totalorder %s142, %s143
    %p155 = scmp.eq.s32.totalorder %s23, 3
    %p156 = por %p154, %p155
    %p158 = scmp.ne.s32.totalorder %s143, %s157
    %p159 = scmp.eq.s32.totalorder %s23, 0
    %p160 = por %p158, %p159
    %s162 = sadd.s32 %s161, 1
    %p165 = scmp.eq.s32.totalorder %s17, 3
    %p166 = scmp.ne.s32.totalorder %s161, %s163
    %p167 = scmp.eq.s32.totalorder %s17, 0
    %p168 = por %p166, %p167
    %p169 = scmp.ne.s32.totalorder %s161, %s163
    %p170 = scmp.eq.s32.totalorder %s22, 3
    %p171 = por %p169, %p170
    %p172 = scmp.ne.s32.totalorder %s163, %s164
    %p173 = scmp.eq.s32.totalorder %s22, 0
    %p174 = por %p172, %p173
    %p175 = scmp.ne.s32.totalorder %s163, %s164
    %p176 = scmp.eq.s32.totalorder %s23, 3
    %p177 = por %p175, %p176
    %p179 = scmp.ne.s32.totalorder %s164, %s178
    %p180 = scmp.eq.s32.totalorder %s23, 0
    %p181 = por %p179, %p180
    %s183 = sadd.s32 %s182, 1
    %p186 = scmp.eq.s32.totalorder %s17, 3
    %p187 = scmp.ne.s32.totalorder %s182, %s184
    %p188 = scmp.eq.s32.totalorder %s17, 0
    %p189 = por %p187, %p188
    %p190 = scmp.ne.s32.totalorder %s182, %s184
    %p191 = scmp.eq.s32.totalorder %s22, 3
    %p192 = por %p190, %p191
    %p193 = scmp.ne.s32.totalorder %s184, %s185
    %p194 = scmp.eq.s32.totalorder %s22, 0
    %p195 = por %p193, %p194
    %p196 = scmp.ne.s32.totalorder %s184, %s185
    %p197 = scmp.eq.s32.totalorder %s23, 3
    %p198 = por %p196, %p197
    %p200 = scmp.ne.s32.totalorder %s185, %s199
    %p201 = scmp.eq.s32.totalorder %s23, 0
    %p202 = por %p200, %p201
    %s204 = sadd.s32 %s203, 1
    %p207 = scmp.eq.s32.totalorder %s17, 3
    %p208 = scmp.ne.s32.totalorder %s203, %s205
    %p209 = scmp.eq.s32.totalorder %s17, 0
    %p210 = por %p208, %p209
    %p211 = scmp.ne.s32.totalorder %s203, %s205
    %p212 = scmp.eq.s32.totalorder %s22, 3
    %p213 = por %p211, %p212
    %p214 = scmp.ne.s32.totalorder %s205, %s206
    %p215 = scmp.eq.s32.totalorder %s22, 0
    %p216 = por %p214, %p215
    %p217 = scmp.ne.s32.totalorder %s205, %s206
    %p218 = scmp.eq.s32.totalorder %s23, 3
    %p219 = por %p217, %p218
    %p221 = scmp.ne.s32.totalorder %s206, %s220
    %p222 = scmp.eq.s32.totalorder %s23, 0
    %p223 = por %p221, %p222
    %s224 = ssub.s32 %s17, %s24
    %p225 = scmp.eq.s32.totalorder %s224, 0
    %s227 = sadd.s32 %s226, 1
    %s228 = scalar_select %p225, %s226, %s227
    %p231 = pneg %p225
    %p232 = scmp.eq.s32.totalorder %s17, 3
    %p233 = por %p231, %p232
    %p234 = scmp.ne.s32.totalorder %s226, %s229
    %p235 = scmp.eq.s32.totalorder %s17, 0
    %p236 = por %p234, %p235
    %p237 = scmp.ne.s32.totalorder %s226, %s229
    %p238 = scmp.eq.s32.totalorder %s22, 3
    %p239 = por %p237, %p238
    %p240 = scmp.ne.s32.totalorder %s229, %s230
    %p241 = scmp.eq.s32.totalorder %s22, 0
    %p242 = por %p240, %p241
    %p243 = scmp.ne.s32.totalorder %s229, %s230
    %p244 = scmp.eq.s32.totalorder %s23, 3
    %p245 = por %p243, %p244
    %p247 = scmp.ne.s32.totalorder %s230, %s246
    %p248 = scmp.eq.s32.totalorder %s23, 0
    %p249 = por %p247, %p248
    %s250 = ssub.s32 %s17, %s24
    %p251 = scmp.eq.s32.totalorder %s250, 0
    %s253 = sadd.s32 %s252, 1
    %s254 = scalar_select %p251, %s252, %s253
    %p257 = pneg %p251
    %p258 = scmp.eq.s32.totalorder %s17, 3
    %p259 = por %p257, %p258
    %p260 = scmp.ne.s32.totalorder %s252, %s255
    %p261 = scmp.eq.s32.totalorder %s17, 0
    %p262 = por %p260, %p261
    %p263 = scmp.ne.s32.totalorder %s252, %s255
    %p264 = scmp.eq.s32.totalorder %s22, 3
    %p265 = por %p263, %p264
    %p266 = scmp.ne.s32.totalorder %s255, %s256
    %p267 = scmp.eq.s32.totalorder %s22, 0
    %p268 = por %p266, %p267
    %p269 = scmp.ne.s32.totalorder %s255, %s256
    %p270 = scmp.eq.s32.totalorder %s23, 3
    %p271 = por %p269, %p270
    %p273 = scmp.ne.s32.totalorder %s256, %s272
    %p274 = scmp.eq.s32.totalorder %s23, 0
    %p275 = por %p273, %p274
    %p276 = scmp.le.s32.totalorder 1, %s17
    %p277 = scmp.lt.s32.totalorder %s17, 5
    %p278 = pnand %p276, %p277
    %p279 = pneg %p278
    // Predicated region
    $region9: #{gen_u0_forward.1} parent=5 // pred_check
      _
    $region10: #{gen_u0_forward.1} parent=5 // pred_check_branch
      %281 = sbr.rel (%p278) target = $region12
    $region11: #{gen_u0_forward.1} parent=5 // pred_region
      %s282 = ssub.s32 %s17, 1
      // Predicated region
      $region13: #{gen_u0_forward.1} parent=11 // pred_check
        %p283 = pneg %p90
      $region14: #{gen_u0_forward.1} parent=11 // pred_check_branch
        %285 = sbr.rel (%p283) target = $region16
      $region15: #{gen_u0_forward.1} parent=11 // pred_region
        _
      $region16: #{gen_u0_forward.1} parent=11 // pred_fallthru
        _
      // Predicated region
      $region17: #{gen_u0_forward.1} parent=11 // pred_check
        %p286 = pneg %p111
      $region18: #{gen_u0_forward.1} parent=11 // pred_check_branch
        %288 = sbr.rel (%p286) target = $region20
      $region19: #{gen_u0_forward.1} parent=11 // pred_region
        _
      $region20: #{gen_u0_forward.1} parent=11 // pred_fallthru
        _
      // Predicated region
      $region21: #{gen_u0_forward.1} parent=11 // pred_check
        %p289 = pneg %p132
      $region22: #{gen_u0_forward.1} parent=11 // pred_check_branch
        %291 = sbr.rel (%p289) target = $region24
      $region23: #{gen_u0_forward.1} parent=11 // pred_region
        _
      $region24: #{gen_u0_forward.1} parent=11 // pred_fallthru
        _
      // Predicated region
      $region25: #{gen_u0_forward.1} parent=11 // pred_check
        %p292 = pneg %p153
      $region26: #{gen_u0_forward.1} parent=11 // pred_check_branch
        %294 = sbr.rel (%p292) target = $region28
      $region27: #{gen_u0_forward.1} parent=11 // pred_region
        _
      $region28: #{gen_u0_forward.1} parent=11 // pred_fallthru
        _
      // Predicated region
      $region29: #{gen_u0_forward.1} parent=11 // pred_check
        %p295 = pneg %p174
      $region30: #{gen_u0_forward.1} parent=11 // pred_check_branch
        %297 = sbr.rel (%p295) target = $region32
      $region31: #{gen_u0_forward.1} parent=11 // pred_region
        _
      $region32: #{gen_u0_forward.1} parent=11 // pred_fallthru
        _
      // Predicated region
      $region33: #{gen_u0_forward.1} parent=11 // pred_check
        %p298 = pneg %p195
      $region34: #{gen_u0_forward.1} parent=11 // pred_check_branch
        %300 = sbr.rel (%p298) target = $region36
      $region35: #{gen_u0_forward.1} parent=11 // pred_region
        _
      $region36: #{gen_u0_forward.1} parent=11 // pred_fallthru
        _
      // Predicated region
      $region37: #{gen_u0_forward.1} parent=11 // pred_check
        %p301 = pneg %p216
      $region38: #{gen_u0_forward.1} parent=11 // pred_check_branch
        %303 = sbr.rel (%p301) target = $region40
      $region39: #{gen_u0_forward.1} parent=11 // pred_region
        _
      $region40: #{gen_u0_forward.1} parent=11 // pred_fallthru
        _
    $region12: #{gen_u0_forward.1} parent=5 // pred_fallthru
      _
    %p304 = scmp.lt.s32.totalorder %s17, 4
    // Predicated region
    $region41: #{gen_u0_forward.1} parent=5 // pred_check
      %p305 = pneg %p304
    $region42: #{gen_u0_forward.1} parent=5 // pred_check_branch
      %307 = sbr.rel (%p305) target = $region44
    $region43: #{gen_u0_forward.1} parent=5 // pred_region
      // Predicated region
      $region45: #{gen_u0_forward.1} parent=43 // pred_check
        %p308 = pneg %p37
      $region46: #{gen_u0_forward.1} parent=43 // pred_check_branch
        %310 = sbr.rel (%p308) target = $region48
      $region47: #{gen_u0_forward.1} parent=43 // pred_region
        %p311 = scmp.lt.s32.totalorder %s17, 3
        %s312 = scalar_select %p311, %s17, 3
        %s313 = smul.addr %s312, 8
        %s314 = scalar_lea.vmem %s0, %s313
      $region48: #{gen_u0_forward.1} parent=43 // pred_fallthru
        _
      // Predicated region
      $region49: #{gen_u0_forward.1} parent=43 // pred_check
        %p315 = pneg %p63
      $region50: #{gen_u0_forward.1} parent=43 // pred_check_branch
        %317 = sbr.rel (%p315) target = $region52
      $region51: #{gen_u0_forward.1} parent=43 // pred_region
        %p318 = scmp.lt.s32.totalorder %s17, 3
        %s319 = scalar_select %p318, %s17, 3
        %s320 = smul.addr %s319, 8
        %s321 = scalar_lea.vmem %s1, %s320
      $region52: #{gen_u0_forward.1} parent=43 // pred_fallthru
        _
    $region44: #{gen_u0_forward.1} parent=5 // pred_fallthru
      _
    %p322 = scmp.le.s32.totalorder 1, %s17
    %p323 = scmp.lt.s32.totalorder %s17, 5
    %p324 = pnand %p322, %p323
    %p325 = pneg %p324
    // Predicated region
    $region53: #{gen_u0_forward.1} parent=5 // pred_check
      _
    $region54: #{gen_u0_forward.1} parent=5 // pred_check_branch
      %327 = sbr.rel (%p324) target = $region56
    $region55: #{gen_u0_forward.1} parent=5 // pred_region
      %s328 = ssub.s32 %s17, 1
      %p329 = scmp.lt.s32.totalorder %s22, 3
      %s330 = scalar_select %p329, %s22, 3
      %s331 = smul.addr %s330, 8
      %s332 = scalar_lea.vmem %s0, %s331
      %p333 = pneg %p43
      %p334 = pneg %p40
      %p335 = scmp.lt.s32.totalorder %s22, 3
      %s336 = scalar_select %p335, %s22, 3
      %s337 = smul.addr %s336, 8
      %s338 = scalar_lea.vmem %s1, %s337
      %p339 = pneg %p69
      %p340 = pneg %p66
      %p341 = pneg %p90
      %p342 = pneg %p87
      %p343 = pneg %p111
      %p344 = pneg %p108
      %p345 = pneg %p132
      %p346 = pneg %p129
      %p347 = pneg %p153
      %p348 = pneg %p150
      %p349 = pneg %p174
      %p350 = pneg %p171
      %p351 = pneg %p195
      %p352 = pneg %p192
      %p353 = pneg %p216
      %p354 = pneg %p213
      %p355 = pneg %p242
      %p356 = pneg %p239
      %p357 = scmp.lt.s32.totalorder %s22, 3
      %s358 = scalar_select %p357, %s22, 3
      %s359 = smul.addr %s358, 2
      %s360 = smul.addr %s359, 8
      %s361 = scalar_lea.vmem %s9, %s360
      %p362 = pneg %p268
      %p363 = pneg %p265
      %p364 = scmp.lt.s32.totalorder %s22, 3
      %s365 = scalar_select %p364, %s22, 3
      %s366 = smul.addr %s365, 8
      %s367 = scalar_lea.vmem %s10, %s366
      %p368 = scmp.lt.s32.totalorder %s22, 3
      %s369 = scalar_select %p368, %s22, 3
      %s370 = smul.addr %s369, 8
      %s371 = scalar_lea.vmem %s0, %s370
      %p372 = scmp.lt.s32.totalorder %s22, 3
      %s373 = scalar_select %p372, %s22, 3
      %s374 = smul.addr %s373, 8
      %s375 = scalar_lea.vmem %s1, %s374
      %p376 = scmp.lt.s32.totalorder %s22, 3
      %s377 = scalar_select %p376, %s22, 3
      %s378 = smul.addr %s377, 2
      %s379 = smul.addr %s378, 8
      %s380 = scalar_lea.vmem %s9, %s379
      %p381 = scmp.lt.s32.totalorder %s22, 3
      %s382 = scalar_select %p381, %s22, 3
      %s383 = smul.addr %s382, 8
      %s384 = scalar_lea.vmem %s10, %s383
      %v386 = vld [vmem:[%s371] sm:$0xff]
      %v387 = vld [vmem:[%s375] sm:$0xff]
      %v388 = vld [vmem:[%s2] sm:$0x1]
      %390 = vset.pattern.permute.xlu0 0
      %391 = vperm.xlu0 %390, %v386
      %v392 = vpop.permute.xlu0 %391
      %v394 = vlaneseq
      %v395 = vshrl.u32 %v394, 7
      %v396 = vsub.s32 0, %v395
      %v397 = vrot.slane %v388, %v396
      %v398 = vmul.f32 %v392, %v397
      %v399 = vld [vmem:[%s2 + $0x1] sm:$0x1]
      %v400 = vlaneseq
      %v401 = vshrl.u32 %v400, 7
      %v402 = vsub.s32 0, %v401
      %v403 = vrot.slane %v399, %v402
      %v404 = vadd.f32 %v398, %v403
      %v405 = vmax.f32 %v404, 0.0
      %v406 = vld [vmem:[%s3] sm:$0xf]
      %v407 = vld [vmem:[%s3 + $0x4] sm:$0xf]
      %v408 = vld [vmem:[%s3 + $0x8] sm:$0xf]
      %v409 = vld [vmem:[%s3 + $0xc] sm:$0xf]
      %v410 = vld [vmem:[%s3 + $0x10] sm:$0xf]
      %v411 = vld [vmem:[%s3 + $0x14] sm:$0xf]
      %v412 = vld [vmem:[%s3 + $0x18] sm:$0xf]
      %v413 = vld [vmem:[%s3 + $0x1c] sm:$0xf]
      %v414 = vld [vmem:[%s3 + $0x20] sm:$0xf]
      %v415 = vld [vmem:[%s3 + $0x24] sm:$0xf]
      %v416 = vld [vmem:[%s3 + $0x28] sm:$0xf]
      %v417 = vld [vmem:[%s3 + $0x2c] sm:$0xf]
      %v418 = vld [vmem:[%s3 + $0x30] sm:$0xf]
      %v419 = vld [vmem:[%s3 + $0x34] sm:$0xf]
      %v420 = vld [vmem:[%s3 + $0x38] sm:$0xf]
      %v421 = vld [vmem:[%s3 + $0x3c] sm:$0xf]
      %v422 = vpack.c.bf16 %v405, %v405
      %v423 = vld [vmem:[%s4] sm:$0x1]
      %v425 = vlaneseq
      %v426 = vshrl.u32 %v425, 7
      %v427 = vsub.s32 0, %v426
      %v428 = vrot.slane %v423, %v427
      %v446 = vunpack.c.l.b16 %v406
      %v447 = vunpack.c.l.b16 %v407
      %v448 = vunpack.c.l.b16 %v408
      %v449 = vunpack.c.l.b16 %v409
      %v450 = vunpack.c.l.b16 %v410
      %v451 = vunpack.c.l.b16 %v411
      %v452 = vunpack.c.l.b16 %v412
      %v453 = vunpack.c.l.b16 %v413
      %v454 = vunpack.c.l.b16 %v414
      %v455 = vunpack.c.l.b16 %v415
      %v456 = vunpack.c.l.b16 %v416
      %v457 = vunpack.c.l.b16 %v417
      %v458 = vunpack.c.l.b16 %v418
      %v459 = vunpack.c.l.b16 %v419
      %v460 = vunpack.c.l.b16 %v420
      %v461 = vunpack.c.l.b16 %v421
      %v462 = vpack.c.b16 %v447, %v446
      %v463 = vpack.c.b16 %v449, %v448
      %v464 = vpack.c.b16 %v451, %v450
      %v465 = vpack.c.b16 %v453, %v452
      %v466 = vpack.c.b16 %v455, %v454
      %v467 = vpack.c.b16 %v457, %v456
      %v468 = vpack.c.b16 %v459, %v458
      %v469 = vpack.c.b16 %v461, %v460
      %478 = vmatprep.subr.bf16.mxu0 0
      %479 = vmatpush1.bf16.msra.mxu0 %v462
      %480 = vmatprep.subr.bf16.mxu0 0
      %481 = vmatpush1.bf16.msra.mxu0 %v463
      %482 = vmatprep.subr.bf16.mxu0 0
      %483 = vmatpush1.bf16.msra.mxu0 %v464
      %484 = vmatprep.subr.bf16.mxu0 0
      %485 = vmatpush1.bf16.msra.mxu0 %v465
      %486 = vmatprep.subr.bf16.mxu0 0
      %487 = vmatpush1.bf16.msra.mxu0 %v466
      %488 = vmatprep.subr.bf16.mxu0 0
      %489 = vmatpush1.bf16.msra.mxu0 %v467
      %490 = vmatprep.subr.bf16.mxu0 0
      %491 = vmatpush1.bf16.msra.mxu0 %v468
      %492 = vmatprep.subr.bf16.mxu0 0
      %493 = vmatpush1.bf16.msra.mxu0 %v469
      %494 = vmatprep.subr.bf16.mxu0 0
      %495 = vmatpush1.bf16.msra.mxu0 0
      %496 = vmatprep.subr.bf16.mxu0 0
      %497 = vmatpush1.bf16.msra.mxu0 0
      %498 = vmatprep.subr.bf16.mxu0 0
      %499 = vmatpush1.bf16.msra.mxu0 0
      %500 = vmatprep.subr.bf16.mxu0 0
      %501 = vmatpush1.bf16.msra.mxu0 0
      %502 = vmatprep.subr.bf16.mxu0 0
      %503 = vmatpush1.bf16.msra.mxu0 0
      %504 = vmatprep.subr.bf16.mxu0 0
      %505 = vmatpush1.bf16.msra.mxu0 0
      %506 = vmatprep.subr.bf16.mxu0 0
      %507 = vmatpush1.bf16.msra.mxu0 0
      %508 = vmatprep.subr.bf16.mxu0 0
      %509 = vmatpush1.bf16.msra.mxu0 0
      %510 = vmatprep.mubr.bf16.mxu0 0
      %511 = vmatmul.mubr.bf16.gmra.mrb[0].mxu0 %v422
      %v512 = vpop.f32.mrb[0].mxu0
      %v513 = vadd.f32 %v428, %v512
      %v514 = vpop.f32.mrb[0].mxu0
      %v515 = vpop.f32.mrb[0].mxu0
      %v516 = vpop.f32.mrb[0].mxu0
      %517 = vdwg.mxu0
      %v518 = vmax.f32 %v513, 0.0
      %s519 = scalar_lea.vmem %s3, 64
      %v520 = vld [vmem:[%s519] sm:$0xf]
      %v521 = vld [vmem:[%s519 + $0x4] sm:$0xf]
      %v522 = vld [vmem:[%s519 + $0x8] sm:$0xf]
      %v523 = vld [vmem:[%s519 + $0xc] sm:$0xf]
      %v524 = vld [vmem:[%s519 + $0x10] sm:$0xf]
      %v525 = vld [vmem:[%s519 + $0x14] sm:$0xf]
      %v526 = vld [vmem:[%s519 + $0x18] sm:$0xf]
      %v527 = vld [vmem:[%s519 + $0x1c] sm:$0xf]
      %v528 = vld [vmem:[%s519 + $0x20] sm:$0xf]
      %v529 = vld [vmem:[%s519 + $0x24] sm:$0xf]
      %v530 = vld [vmem:[%s519 + $0x28] sm:$0xf]
      %v531 = vld [vmem:[%s519 + $0x2c] sm:$0xf]
      %v532 = vld [vmem:[%s519 + $0x30] sm:$0xf]
      %v533 = vld [vmem:[%s519 + $0x34] sm:$0xf]
      %v534 = vld [vmem:[%s519 + $0x38] sm:$0xf]
      %v535 = vld [vmem:[%s519 + $0x3c] sm:$0xf]
      %v536 = vpack.c.bf16 %v518, %v518
      %s537 = scalar_lea.vmem %s4, 1
      %v538 = vld [vmem:[%s537] sm:$0x1]
      %v540 = vlaneseq
      %v541 = vshrl.u32 %v540, 7
      %v542 = vsub.s32 0, %v541
      %v543 = vrot.slane %v538, %v542
      %v561 = vunpack.c.l.b16 %v520
      %v562 = vunpack.c.l.b16 %v521
      %v563 = vunpack.c.l.b16 %v522
      %v564 = vunpack.c.l.b16 %v523
      %v565 = vunpack.c.l.b16 %v524
      %v566 = vunpack.c.l.b16 %v525
      %v567 = vunpack.c.l.b16 %v526
      %v568 = vunpack.c.l.b16 %v527
      %v569 = vunpack.c.l.b16 %v528
      %v570 = vunpack.c.l.b16 %v529
      %v571 = vunpack.c.l.b16 %v530
      %v572 = vunpack.c.l.b16 %v531
      %v573 = vunpack.c.l.b16 %v532
      %v574 = vunpack.c.l.b16 %v533
      %v575 = vunpack.c.l.b16 %v534
      %v576 = vunpack.c.l.b16 %v535
      %v577 = vpack.c.b16 %v562, %v561
      %v578 = vpack.c.b16 %v564, %v563
      %v579 = vpack.c.b16 %v566, %v565
      %v580 = vpack.c.b16 %v568, %v567
      %v581 = vpack.c.b16 %v570, %v569
      %v582 = vpack.c.b16 %v572, %v571
      %v583 = vpack.c.b16 %v574, %v573
      %v584 = vpack.c.b16 %v576, %v575
      %593 = vmatprep.subr.bf16.mxu0 0
      %594 = vmatpush1.bf16.msra.mxu0 %v577
      %595 = vmatprep.subr.bf16.mxu0 0
      %596 = vmatpush1.bf16.msra.mxu0 %v578
      %597 = vmatprep.subr.bf16.mxu0 0
      %598 = vmatpush1.bf16.msra.mxu0 %v579
      %599 = vmatprep.subr.bf16.mxu0 0
      %600 = vmatpush1.bf16.msra.mxu0 %v580
      %601 = vmatprep.subr.bf16.mxu0 0
      %602 = vmatpush1.bf16.msra.mxu0 %v581
      %603 = vmatprep.subr.bf16.mxu0 0
      %604 = vmatpush1.bf16.msra.mxu0 %v582
      %605 = vmatprep.subr.bf16.mxu0 0
      %606 = vmatpush1.bf16.msra.mxu0 %v583
      %607 = vmatprep.subr.bf16.mxu0 0
      %608 = vmatpush1.bf16.msra.mxu0 %v584
      %609 = vmatprep.subr.bf16.mxu0 0
      %610 = vmatpush1.bf16.msra.mxu0 0
      %611 = vmatprep.subr.bf16.mxu0 0
      %612 = vmatpush1.bf16.msra.mxu0 0
      %613 = vmatprep.subr.bf16.mxu0 0
      %614 = vmatpush1.bf16.msra.mxu0 0
      %615 = vmatprep.subr.bf16.mxu0 0
      %616 = vmatpush1.bf16.msra.mxu0 0
      %617 = vmatprep.subr.bf16.mxu0 0
      %618 = vmatpush1.bf16.msra.mxu0 0
      %619 = vmatprep.subr.bf16.mxu0 0
      %620 = vmatpush1.bf16.msra.mxu0 0
      %621 = vmatprep.subr.bf16.mxu0 0
      %622 = vmatpush1.bf16.msra.mxu0 0
      %623 = vmatprep.subr.bf16.mxu0 0
      %624 = vmatpush1.bf16.msra.mxu0 0
      %625 = vmatprep.mubr.bf16.mxu0 0
      %626 = vmatmul.mubr.bf16.gmra.mrb[0].mxu0 %v536
      %v627 = vpop.f32.mrb[0].mxu0
      %v628 = vadd.f32 %v543, %v627
      %v629 = vpop.f32.mrb[0].mxu0
      %v630 = vpop.f32.mrb[0].mxu0
      %v631 = vpop.f32.mrb[0].mxu0
      %632 = vdwg.mxu0
      %v633 = vmax.f32 %v628, 0.0
      %v634 = vld [vmem:[%s5] sm:$0xf]
      %v635 = vld [vmem:[%s5 + $0x4] sm:$0xf]
      %v636 = vld [vmem:[%s5 + $0x8] sm:$0xf]
      %v637 = vld [vmem:[%s5 + $0xc] sm:$0xf]
      %v638 = vld [vmem:[%s5 + $0x10] sm:$0xf]
      %v639 = vld [vmem:[%s5 + $0x14] sm:$0xf]
      %v640 = vld [vmem:[%s5 + $0x18] sm:$0xf]
      %v641 = vld [vmem:[%s5 + $0x1c] sm:$0xf]
      %v642 = vld [vmem:[%s5 + $0x20] sm:$0xf]
      %v643 = vld [vmem:[%s5 + $0x24] sm:$0xf]
      %v644 = vld [vmem:[%s5 + $0x28] sm:$0xf]
      %v645 = vld [vmem:[%s5 + $0x2c] sm:$0xf]
      %v646 = vld [vmem:[%s5 + $0x30] sm:$0xf]
      %v647 = vld [vmem:[%s5 + $0x34] sm:$0xf]
      %v648 = vld [vmem:[%s5 + $0x38] sm:$0xf]
      %v649 = vld [vmem:[%s5 + $0x3c] sm:$0xf]
      %v650 = vpack.c.bf16 %v633, %v633
      %v651 = vld [vmem:[%s6] sm:$0x1]
      %v653 = vlaneseq
      %v654 = vshrl.u32 %v653, 7
      %v655 = vsub.s32 0, %v654
      %v656 = vrot.slane %v651, %v655
      %v674 = vunpack.c.l.b16 %v634
      %v675 = vunpack.c.l.b16 %v635
      %v676 = vunpack.c.l.b16 %v636
      %v677 = vunpack.c.l.b16 %v637
      %v678 = vunpack.c.l.b16 %v638
      %v679 = vunpack.c.l.b16 %v639
      %v680 = vunpack.c.l.b16 %v640
      %v681 = vunpack.c.l.b16 %v641
      %v682 = vunpack.c.l.b16 %v642
      %v683 = vunpack.c.l.b16 %v643
      %v684 = vunpack.c.l.b16 %v644
      %v685 = vunpack.c.l.b16 %v645
      %v686 = vunpack.c.l.b16 %v646
      %v687 = vunpack.c.l.b16 %v647
      %v688 = vunpack.c.l.b16 %v648
      %v689 = vunpack.c.l.b16 %v649
      %v690 = vpack.c.b16 %v675, %v674
      %v691 = vpack.c.b16 %v677, %v676
      %v692 = vpack.c.b16 %v679, %v678
      %v693 = vpack.c.b16 %v681, %v680
      %v694 = vpack.c.b16 %v683, %v682
      %v695 = vpack.c.b16 %v685, %v684
      %v696 = vpack.c.b16 %v687, %v686
      %v697 = vpack.c.b16 %v689, %v688
      %706 = vmatprep.subr.bf16.mxu0 0
      %707 = vmatpush1.bf16.msra.mxu0 %v690
      %708 = vmatprep.subr.bf16.mxu0 0
      %709 = vmatpush1.bf16.msra.mxu0 %v691
      %710 = vmatprep.subr.bf16.mxu0 0
      %711 = vmatpush1.bf16.msra.mxu0 %v692
      %712 = vmatprep.subr.bf16.mxu0 0
      %713 = vmatpush1.bf16.msra.mxu0 %v693
      %714 = vmatprep.subr.bf16.mxu0 0
      %715 = vmatpush1.bf16.msra.mxu0 %v694
      %716 = vmatprep.subr.bf16.mxu0 0
      %717 = vmatpush1.bf16.msra.mxu0 %v695
      %718 = vmatprep.subr.bf16.mxu0 0
      %719 = vmatpush1.bf16.msra.mxu0 %v696
      %720 = vmatprep.subr.bf16.mxu0 0
      %721 = vmatpush1.bf16.msra.mxu0 %v697
      %722 = vmatprep.subr.bf16.mxu0 0
      %723 = vmatpush1.bf16.msra.mxu0 0
      %724 = vmatprep.subr.bf16.mxu0 0
      %725 = vmatpush1.bf16.msra.mxu0 0
      %726 = vmatprep.subr.bf16.mxu0 0
      %727 = vmatpush1.bf16.msra.mxu0 0
      %728 = vmatprep.subr.bf16.mxu0 0
      %729 = vmatpush1.bf16.msra.mxu0 0
      %730 = vmatprep.subr.bf16.mxu0 0
      %731 = vmatpush1.bf16.msra.mxu0 0
      %732 = vmatprep.subr.bf16.mxu0 0
      %733 = vmatpush1.bf16.msra.mxu0 0
      %734 = vmatprep.subr.bf16.mxu0 0
      %735 = vmatpush1.bf16.msra.mxu0 0
      %736 = vmatprep.subr.bf16.mxu0 0
      %737 = vmatpush1.bf16.msra.mxu0 0
      %738 = vmatprep.mubr.bf16.mxu0 0
      %739 = vmatmul.mubr.bf16.gmra.mrb[0].mxu0 %v650
      %v740 = vpop.f32.mrb[0].mxu0
      %v741 = vadd.f32 %v656, %v740
      %v742 = vpop.f32.mrb[0].mxu0
      %v743 = vpop.f32.mrb[0].mxu0
      %v744 = vpop.f32.mrb[0].mxu0
      %745 = vdwg.mxu0
      %v746 = vld [vmem:[%s2 + $0x2] sm:$0x1]
      %v747 = vlaneseq
      %v748 = vshrl.u32 %v747, 7
      %v749 = vsub.s32 0, %v748
      %v750 = vrot.slane %v746, %v749
      %v751 = vmul.f32 %v392, %v750
      %v752 = vld [vmem:[%s2 + $0x3] sm:$0x1]
      %v753 = vlaneseq
      %v754 = vshrl.u32 %v753, 7
      %v755 = vsub.s32 0, %v754
      %v756 = vrot.slane %v752, %v755
      %v757 = vadd.f32 %v751, %v756
      %v758 = vmax.f32 %v757, 0.0
      %s759 = scalar_lea.vmem %s3, 128
      %v760 = vld [vmem:[%s759] sm:$0xf]
      %v761 = vld [vmem:[%s759 + $0x4] sm:$0xf]
      %v762 = vld [vmem:[%s759 + $0x8] sm:$0xf]
      %v763 = vld [vmem:[%s759 + $0xc] sm:$0xf]
      %v764 = vld [vmem:[%s759 + $0x10] sm:$0xf]
      %v765 = vld [vmem:[%s759 + $0x14] sm:$0xf]
      %v766 = vld [vmem:[%s759 + $0x18] sm:$0xf]
      %v767 = vld [vmem:[%s759 + $0x1c] sm:$0xf]
      %v768 = vld [vmem:[%s759 + $0x20] sm:$0xf]
      %v769 = vld [vmem:[%s759 + $0x24] sm:$0xf]
      %v770 = vld [vmem:[%s759 + $0x28] sm:$0xf]
      %v771 = vld [vmem:[%s759 + $0x2c] sm:$0xf]
      %v772 = vld [vmem:[%s759 + $0x30] sm:$0xf]
      %v773 = vld [vmem:[%s759 + $0x34] sm:$0xf]
      %v774 = vld [vmem:[%s759 + $0x38] sm:$0xf]
      %v775 = vld [vmem:[%s759 + $0x3c] sm:$0xf]
      %v776 = vpack.c.bf16 %v758, %v758
      %s777 = scalar_lea.vmem %s4, 2
      %v778 = vld [vmem:[%s777] sm:$0x1]
      %v780 = vlaneseq
      %v781 = vshrl.u32 %v780, 7
      %v782 = vsub.s32 0, %v781
      %v783 = vrot.slane %v778, %v782
      %v801 = vunpack.c.l.b16 %v760
      %v802 = vunpack.c.l.b16 %v761
      %v803 = vunpack.c.l.b16 %v762
      %v804 = vunpack.c.l.b16 %v763
      %v805 = vunpack.c.l.b16 %v764
      %v806 = vunpack.c.l.b16 %v765
      %v807 = vunpack.c.l.b16 %v766
      %v808 = vunpack.c.l.b16 %v767
      %v809 = vunpack.c.l.b16 %v768
      %v810 = vunpack.c.l.b16 %v769
      %v811 = vunpack.c.l.b16 %v770
      %v812 = vunpack.c.l.b16 %v771
      %v813 = vunpack.c.l.b16 %v772
      %v814 = vunpack.c.l.b16 %v773
      %v815 = vunpack.c.l.b16 %v774
      %v816 = vunpack.c.l.b16 %v775
      %v817 = vpack.c.b16 %v802, %v801
      %v818 = vpack.c.b16 %v804, %v803
      %v819 = vpack.c.b16 %v806, %v805
      %v820 = vpack.c.b16 %v808, %v807
      %v821 = vpack.c.b16 %v810, %v809
      %v822 = vpack.c.b16 %v812, %v811
      %v823 = vpack.c.b16 %v814, %v813
      %v824 = vpack.c.b16 %v816, %v815
      %833 = vmatprep.subr.bf16.mxu0 0
      %834 = vmatpush1.bf16.msra.mxu0 %v817
      %835 = vmatprep.subr.bf16.mxu0 0
      %836 = vmatpush1.bf16.msra.mxu0 %v818
      %837 = vmatprep.subr.bf16.mxu0 0
      %838 = vmatpush1.bf16.msra.mxu0 %v819
      %839 = vmatprep.subr.bf16.mxu0 0
      %840 = vmatpush1.bf16.msra.mxu0 %v820
      %841 = vmatprep.subr.bf16.mxu0 0
      %842 = vmatpush1.bf16.msra.mxu0 %v821
      %843 = vmatprep.subr.bf16.mxu0 0
      %844 = vmatpush1.bf16.msra.mxu0 %v822
      %845 = vmatprep.subr.bf16.mxu0 0
      %846 = vmatpush1.bf16.msra.mxu0 %v823
      %847 = vmatprep.subr.bf16.mxu0 0
      %848 = vmatpush1.bf16.msra.mxu0 %v824
      %849 = vmatprep.subr.bf16.mxu0 0
      %850 = vmatpush1.bf16.msra.mxu0 0
      %851 = vmatprep.subr.bf16.mxu0 0
      %852 = vmatpush1.bf16.msra.mxu0 0
      %853 = vmatprep.subr.bf16.mxu0 0
      %854 = vmatpush1.bf16.msra.mxu0 0
      %855 = vmatprep.subr.bf16.mxu0 0
      %856 = vmatpush1.bf16.msra.mxu0 0
      %857 = vmatprep.subr.bf16.mxu0 0
      %858 = vmatpush1.bf16.msra.mxu0 0
      %859 = vmatprep.subr.bf16.mxu0 0
      %860 = vmatpush1.bf16.msra.mxu0 0
      %861 = vmatprep.subr.bf16.mxu0 0
      %862 = vmatpush1.bf16.msra.mxu0 0
      %863 = vmatprep.subr.bf16.mxu0 0
      %864 = vmatpush1.bf16.msra.mxu0 0
      %865 = vmatprep.mubr.bf16.mxu0 0
      %866 = vmatmul.mubr.bf16.gmra.mrb[0].mxu0 %v776
      %v867 = vpop.f32.mrb[0].mxu0
      %v868 = vadd.f32 %v783, %v867
      %v869 = vpop.f32.mrb[0].mxu0
      %v870 = vpop.f32.mrb[0].mxu0
      %v871 = vpop.f32.mrb[0].mxu0
      %872 = vdwg.mxu0
      %v873 = vmax.f32 %v868, 0.0
      %s874 = scalar_lea.vmem %s3, 192
      %v875 = vld [vmem:[%s874] sm:$0xf]
      %v876 = vld [vmem:[%s874 + $0x4] sm:$0xf]
      %v877 = vld [vmem:[%s874 + $0x8] sm:$0xf]
      %v878 = vld [vmem:[%s874 + $0xc] sm:$0xf]
      %v879 = vld [vmem:[%s874 + $0x10] sm:$0xf]
      %v880 = vld [vmem:[%s874 + $0x14] sm:$0xf]
      %v881 = vld [vmem:[%s874 + $0x18] sm:$0xf]
      %v882 = vld [vmem:[%s874 + $0x1c] sm:$0xf]
      %v883 = vld [vmem:[%s874 + $0x20] sm:$0xf]
      %v884 = vld [vmem:[%s874 + $0x24] sm:$0xf]
      %v885 = vld [vmem:[%s874 + $0x28] sm:$0xf]
      %v886 = vld [vmem:[%s874 + $0x2c] sm:$0xf]
      %v887 = vld [vmem:[%s874 + $0x30] sm:$0xf]
      %v888 = vld [vmem:[%s874 + $0x34] sm:$0xf]
      %v889 = vld [vmem:[%s874 + $0x38] sm:$0xf]
      %v890 = vld [vmem:[%s874 + $0x3c] sm:$0xf]
      %v891 = vpack.c.bf16 %v873, %v873
      %s892 = scalar_lea.vmem %s4, 3
      %v893 = vld [vmem:[%s892] sm:$0x1]
      %v895 = vlaneseq
      %v896 = vshrl.u32 %v895, 7
      %v897 = vsub.s32 0, %v896
      %v898 = vrot.slane %v893, %v897
      %v916 = vunpack.c.l.b16 %v875
      %v917 = vunpack.c.l.b16 %v876
      %v918 = vunpack.c.l.b16 %v877
      %v919 = vunpack.c.l.b16 %v878
      %v920 = vunpack.c.l.b16 %v879
      %v921 = vunpack.c.l.b16 %v880
      %v922 = vunpack.c.l.b16 %v881
      %v923 = vunpack.c.l.b16 %v882
      %v924 = vunpack.c.l.b16 %v883
      %v925 = vunpack.c.l.b16 %v884
      %v926 = vunpack.c.l.b16 %v885
      %v927 = vunpack.c.l.b16 %v886
      %v928 = vunpack.c.l.b16 %v887
      %v929 = vunpack.c.l.b16 %v888
      %v930 = vunpack.c.l.b16 %v889
      %v931 = vunpack.c.l.b16 %v890
      %v932 = vpack.c.b16 %v917, %v916
      %v933 = vpack.c.b16 %v919, %v918
      %v934 = vpack.c.b16 %v921, %v920
      %v935 = vpack.c.b16 %v923, %v922
      %v936 = vpack.c.b16 %v925, %v924
      %v937 = vpack.c.b16 %v927, %v926
      %v938 = vpack.c.b16 %v929, %v928
      %v939 = vpack.c.b16 %v931, %v930
      %948 = vmatprep.subr.bf16.mxu0 0
      %949 = vmatpush1.bf16.msra.mxu0 %v932
      %950 = vmatprep.subr.bf16.mxu0 0
      %951 = vmatpush1.bf16.msra.mxu0 %v933
      %952 = vmatprep.subr.bf16.mxu0 0
      %953 = vmatpush1.bf16.msra.mxu0 %v934
      %954 = vmatprep.subr.bf16.mxu0 0
      %955 = vmatpush1.bf16.msra.mxu0 %v935
      %956 = vmatprep.subr.bf16.mxu0 0
      %957 = vmatpush1.bf16.msra.mxu0 %v936
      %958 = vmatprep.subr.bf16.mxu0 0
      %959 = vmatpush1.bf16.msra.mxu0 %v937
      %960 = vmatprep.subr.bf16.mxu0 0
      %961 = vmatpush1.bf16.msra.mxu0 %v938
      %962 = vmatprep.subr.bf16.mxu0 0
      %963 = vmatpush1.bf16.msra.mxu0 %v939
      %964 = vmatprep.subr.bf16.mxu0 0
      %965 = vmatpush1.bf16.msra.mxu0 0
      %966 = vmatprep.subr.bf16.mxu0 0
      %967 = vmatpush1.bf16.msra.mxu0 0
      %968 = vmatprep.subr.bf16.mxu0 0
      %969 = vmatpush1.bf16.msra.mxu0 0
      %970 = vmatprep.subr.bf16.mxu0 0
      %971 = vmatpush1.bf16.msra.mxu0 0
      %972 = vmatprep.subr.bf16.mxu0 0
      %973 = vmatpush1.bf16.msra.mxu0 0
      %974 = vmatprep.subr.bf16.mxu0 0
      %975 = vmatpush1.bf16.msra.mxu0 0
      %976 = vmatprep.subr.bf16.mxu0 0
      %977 = vmatpush1.bf16.msra.mxu0 0
      %978 = vmatprep.subr.bf16.mxu0 0
      %979 = vmatpush1.bf16.msra.mxu0 0
      %980 = vmatprep.mubr.bf16.mxu0 0
      %981 = vmatmul.mubr.bf16.gmra.mrb[0].mxu0 %v891
      %v982 = vpop.f32.mrb[0].mxu0
      %v983 = vadd.f32 %v898, %v982
      %v984 = vpop.f32.mrb[0].mxu0
      %v985 = vpop.f32.mrb[0].mxu0
      %v986 = vpop.f32.mrb[0].mxu0
      %987 = vdwg.mxu0
      %v988 = vmax.f32 %v983, 0.0
      %v989 = vld [vmem:[%s7] sm:$0xff]
      %v990 = vld [vmem:[%s7 + $0x8] sm:$0xff]
      %v991 = vld [vmem:[%s7 + $0x10] sm:$0xff]
      %v992 = vld [vmem:[%s7 + $0x18] sm:$0xff]
      %v993 = vld [vmem:[%s7 + $0x20] sm:$0xff]
      %v994 = vld [vmem:[%s7 + $0x28] sm:$0xff]
      %v995 = vld [vmem:[%s7 + $0x30] sm:$0xff]
      %v996 = vld [vmem:[%s7 + $0x38] sm:$0xff]
      %v997 = vld [vmem:[%s7 + $0x40] sm:$0xff]
      %v998 = vld [vmem:[%s7 + $0x48] sm:$0xff]
      %v999 = vld [vmem:[%s7 + $0x50] sm:$0xff]
      %v1000 = vld [vmem:[%s7 + $0x58] sm:$0xff]
      %v1001 = vld [vmem:[%s7 + $0x60] sm:$0xff]
      %v1002 = vld [vmem:[%s7 + $0x68] sm:$0xff]
      %v1003 = vld [vmem:[%s7 + $0x70] sm:$0xff]
      %v1004 = vld [vmem:[%s7 + $0x78] sm:$0xff]
      %v1005 = vpack.c.bf16 %v988, %v988
      %v1006 = vld [vmem:[%s8] sm:$0x3]
      %v1008 = vlaneseq
      %v1009 = vshrl.u32 %v1008, 7
      %v1010 = vsub.s32 0, %v1009
      %v1011 = vrot.slane %v1006, %v1010
      %v1012 = vlaneseq
      %v1013 = vshrl.u32 %v1012, 7
      %v1014 = vsub.s32 1, %v1013
      %v1015 = vrot.slane %v1006, %v1014
      %v1034 = vunpack.c.l.b16 %v989
      %v1035 = vunpack.c.h.b16 %v989
      %v1036 = vunpack.c.l.b16 %v990
      %v1037 = vunpack.c.h.b16 %v990
      %v1038 = vunpack.c.l.b16 %v991
      %v1039 = vunpack.c.h.b16 %v991
      %v1040 = vunpack.c.l.b16 %v992
      %v1041 = vunpack.c.h.b16 %v992
      %v1042 = vunpack.c.l.b16 %v993
      %v1043 = vunpack.c.h.b16 %v993
      %v1044 = vunpack.c.l.b16 %v994
      %v1045 = vunpack.c.h.b16 %v994
      %v1046 = vunpack.c.l.b16 %v995
      %v1047 = vunpack.c.h.b16 %v995
      %v1048 = vunpack.c.l.b16 %v996
      %v1049 = vunpack.c.h.b16 %v996
      %v1050 = vunpack.c.l.b16 %v997
      %v1051 = vunpack.c.h.b16 %v997
      %v1052 = vunpack.c.l.b16 %v998
      %v1053 = vunpack.c.h.b16 %v998
      %v1054 = vunpack.c.l.b16 %v999
      %v1055 = vunpack.c.h.b16 %v999
      %v1056 = vunpack.c.l.b16 %v1000
      %v1057 = vunpack.c.h.b16 %v1000
      %v1058 = vunpack.c.l.b16 %v1001
      %v1059 = vunpack.c.h.b16 %v1001
      %v1060 = vunpack.c.l.b16 %v1002
      %v1061 = vunpack.c.h.b16 %v1002
      %v1062 = vunpack.c.l.b16 %v1003
      %v1063 = vunpack.c.h.b16 %v1003
      %v1064 = vunpack.c.l.b16 %v1004
      %v1065 = vunpack.c.h.b16 %v1004
      %v1066 = vpack.c.b16 %v1036, %v1034
      %v1067 = vpack.c.b16 %v1037, %v1035
      %v1068 = vpack.c.b16 %v1040, %v1038
      %v1069 = vpack.c.b16 %v1041, %v1039
      %v1070 = vpack.c.b16 %v1044, %v1042
      %v1071 = vpack.c.b16 %v1045, %v1043
      %v1072 = vpack.c.b16 %v1048, %v1046
      %v1073 = vpack.c.b16 %v1049, %v1047
      %v1074 = vpack.c.b16 %v1052, %v1050
      %v1075 = vpack.c.b16 %v1053, %v1051
      %v1076 = vpack.c.b16 %v1056, %v1054
      %v1077 = vpack.c.b16 %v1057, %v1055
      %v1078 = vpack.c.b16 %v1060, %v1058
      %v1079 = vpack.c.b16 %v1061, %v1059
      %v1080 = vpack.c.b16 %v1064, %v1062
      %v1081 = vpack.c.b16 %v1065, %v1063
      %1098 = vmatprep.subr.bf16.mxu0 %v1067
      %1099 = vmatpush1.bf16.msra.mxu0 %v1066
      %1100 = vmatprep.subr.bf16.mxu0 %v1069
      %1101 = vmatpush1.bf16.msra.mxu0 %v1068
      %1102 = vmatprep.subr.bf16.mxu0 %v1071
      %1103 = vmatpush1.bf16.msra.mxu0 %v1070
      %1104 = vmatprep.subr.bf16.mxu0 %v1073
      %1105 = vmatpush1.bf16.msra.mxu0 %v1072
      %1106 = vmatprep.subr.bf16.mxu0 %v1075
      %1107 = vmatpush1.bf16.msra.mxu0 %v1074
      %1108 = vmatprep.subr.bf16.mxu0 %v1077
      %1109 = vmatpush1.bf16.msra.mxu0 %v1076
      %1110 = vmatprep.subr.bf16.mxu0 %v1079
      %1111 = vmatpush1.bf16.msra.mxu0 %v1078
      %1112 = vmatprep.subr.bf16.mxu0 %v1081
      %1113 = vmatpush1.bf16.msra.mxu0 %v1080
      %1114 = vmatprep.subr.bf16.mxu0 0
      %1115 = vmatpush1.bf16.msra.mxu0 0
      %1116 = vmatprep.subr.bf16.mxu0 0
      %1117 = vmatpush1.bf16.msra.mxu0 0
      %1118 = vmatprep.subr.bf16.mxu0 0
      %1119 = vmatpush1.bf16.msra.mxu0 0
      %1120 = vmatprep.subr.bf16.mxu0 0
      %1121 = vmatpush1.bf16.msra.mxu0 0
      %1122 = vmatprep.subr.bf16.mxu0 0
      %1123 = vmatpush1.bf16.msra.mxu0 0
      %1124 = vmatprep.subr.bf16.mxu0 0
      %1125 = vmatpush1.bf16.msra.mxu0 0
      %1126 = vmatprep.subr.bf16.mxu0 0
      %1127 = vmatpush1.bf16.msra.mxu0 0
      %1128 = vmatprep.subr.bf16.mxu0 0
      %1129 = vmatpush1.bf16.msra.mxu0 0
      %1130 = vmatprep.mubr.bf16.mxu0 0
      %1131 = vmatmul.mubr.bf16.gmra.mrb[0].mxu0 %v1005
      %v1132 = vpop.f32.mrb[0].mxu0
      %v1133 = vadd.f32 %v1011, %v1132
      %v1134 = vpop.f32.mrb[0].mxu0
      %v1135 = vadd.f32 %v1015, %v1134
      %v1136 = vpop.f32.mrb[0].mxu0
      %v1137 = vpop.f32.mrb[0].mxu0
      %1138 = vdwg.mxu0
      %1139 = vst [vmem:[%s380] sm:$0xff] %v1133
      %1140 = vst [vmem:[%s380 + $0x8] sm:$0xff] %v1135
      %v1141 = vlaneseq
      %v1142 = vand.u32 %v1141, 127
      %v1143 = vmul.f32 %v1133, %v387
      %1144 = vadd.xlane.f32.xlu0 %v1143
      %v1145 = vpop.xlane.xlu0 %1144
      %vm1146 = vcmp.eq.s32.totalorder %v1142, 0
      %v1147 = vsel %vm1146, %v1145, 0.0
      %v1148 = vadd.f32 %v1147, 0.0
      %v1149 = vmul.f32 %v1135, %v387
      %1150 = vadd.xlane.f32.xlu0 %v1149
      %v1151 = vpop.xlane.xlu0 %1150
      %vm1152 = vcmp.eq.s32.totalorder %v1142, 1
      %v1153 = vsel %vm1152, %v1151, 0.0
      %v1154 = vadd.f32 %v1148, %v1153
      %v1155 = vadd.f32 %v741, 1.0
      %v1156 = vrcp.pop %v1155
      %v1157 = vmul.f32 %v741, %v1156
      %v1158 = vmul.f32 %v1157, 2.0
      %v1159 = vmul.f32 %v1158, %v1154
      %v1160 = vmul.f32 %v1159, 0.01
      %vm1161 = vcmask 15360
      %1162 = vst.msk [vmem:[%s384] sm:$0xff] %vm1161, %v1160
      %p1163 = scmp.lt.s32.totalorder %s22, 3
      %s1164 = scalar_select %p1163, %s22, 3
      %s1165 = smul.addr %s1164, 2
      %s1166 = smul.addr %s1165, 8
      %s1167 = scalar_lea.vmem %s9, %s1166
      %p1168 = scmp.lt.s32.totalorder %s22, 3
      %s1169 = scalar_select %p1168, %s22, 3
      %s1170 = smul.addr %s1169, 8
      %s1171 = scalar_lea.vmem %s10, %s1170
      // Predicated region
      $region57: #{gen_u0_forward.1} parent=55 // pred_check
        %p1172 = pneg %p239
      $region58: #{gen_u0_forward.1} parent=55 // pred_check_branch
        %1174 = sbr.rel (%p1172) target = $region60
      $region59: #{gen_u0_forward.1} parent=55 // pred_region
        _
      $region60: #{gen_u0_forward.1} parent=55 // pred_fallthru
        _
      // Predicated region
      $region61: #{gen_u0_forward.1} parent=55 // pred_check
        %p1175 = pneg %p265
      $region62: #{gen_u0_forward.1} parent=55 // pred_check_branch
        %1177 = sbr.rel (%p1175) target = $region64
      $region63: #{gen_u0_forward.1} parent=55 // pred_region
        _
      $region64: #{gen_u0_forward.1} parent=55 // pred_fallthru
        _
    $region56: #{gen_u0_forward.1} parent=5 // pred_fallthru
      _
    %p1178 = scmp.le.s32.totalorder 2, %s17
    // Predicated region
    $region65: #{gen_u0_forward.1} parent=5 // pred_check
      %p1179 = pneg %p1178
    $region66: #{gen_u0_forward.1} parent=5 // pred_check_branch
      %1181 = sbr.rel (%p1179) target = $region68
    $region67: #{gen_u0_forward.1} parent=5 // pred_region
      %s1182 = ssub.s32 %s17, 2
      // Predicated region
      $region69: #{gen_u0_forward.1} parent=67 // pred_check
        %p1183 = pneg %p245
      $region70: #{gen_u0_forward.1} parent=67 // pred_check_branch
        %1185 = sbr.rel (%p1183) target = $region72
      $region71: #{gen_u0_forward.1} parent=67 // pred_region
        %p1186 = scmp.lt.s32.totalorder %s23, 3
        %s1187 = scalar_select %p1186, %s23, 3
        %s1188 = smul.addr %s1187, 2
        %s1189 = smul.addr %s1188, 8
        %s1190 = scalar_lea.vmem %s9, %s1189
      $region72: #{gen_u0_forward.1} parent=67 // pred_fallthru
        _
      // Predicated region
      $region73: #{gen_u0_forward.1} parent=67 // pred_check
        %p1191 = pneg %p271
      $region74: #{gen_u0_forward.1} parent=67 // pred_check_branch
        %1193 = sbr.rel (%p1191) target = $region76
      $region75: #{gen_u0_forward.1} parent=67 // pred_region
        %p1194 = scmp.lt.s32.totalorder %s23, 3
        %s1195 = scalar_select %p1194, %s23, 3
        %s1196 = smul.addr %s1195, 8
        %s1197 = scalar_lea.vmem %s10, %s1196
      $region76: #{gen_u0_forward.1} parent=67 // pred_fallthru
        _
    $region68: #{gen_u0_forward.1} parent=5 // pred_fallthru
      _
  $region6: #{gen_u0_forward.1} parent=0 // loop_footer
    %s21 = sadd.s32 1, %s17
  $region7: #{gen_u0_forward.1} parent=0 // loop_footer_branch
    %16 = sbr.rel target = $region3
  $region8: #{gen_u0_forward.1} parent=0 // loop_exit
    _

</llo_original>
